<compile_context>
chip_gen: v7x
topology: tpu7x:2x2x1
jax: 0.10.0
libtpu: 0.0.40
codegen_flags: <defaults>
</compile_context>

<pallas_src>
import functools

import jax
import jax.numpy as jnp
from jax import lax
from jax.experimental import pallas as pl
from jax.experimental.pallas import tpu as pltpu


def _pvdm_gather_kernel(B, C, doc_ids_ref, ctx_ref, d_hbm, w_hbm, x_ref,
                        gather_buf, sem):
    """x = D[doc_ids] + sum_c W[contexts[:, c]]   (single grid step).

    doc_ids_ref : SMEM (B,)            int32 (scalar prefetch)
    ctx_ref     : SMEM (B*C,)          int32 (scalar prefetch, flattened)
    d_hbm       : HBM  (doc_n, hid)    f32   (memory_space=ANY, DMA-gathered)
    w_hbm       : HBM  (voc_n, hid)    f32   (memory_space=ANY, DMA-gathered)
    x_ref       : VMEM (B, hid)        output (bf16 by default)
    gather_buf  : VMEM ((C+1)*B, hid)  f32   slot-major: row = slot*B + b
    sem         : DMA semaphores ((C+1)*B,)
    """
    copies = []
    # B, C are small compile-time constants -> fully unrolled so all (C+1)*B
    # row DMAs are in flight simultaneously.
    for b in range(B):
        doc = doc_ids_ref[b]
        cp = pltpu.make_async_copy(
            d_hbm.at[pl.ds(doc, 1), :],
            gather_buf.at[pl.ds(b, 1), :],
            sem.at[b],
        )
        cp.start()
        copies.append(cp)
        for c in range(C):
            idx = ctx_ref[b * C + c]
            row = (c + 1) * B + b
            cp = pltpu.make_async_copy(
                w_hbm.at[pl.ds(idx, 1), :],
                gather_buf.at[pl.ds(row, 1), :],
                sem.at[row],
            )
            cp.start()
            copies.append(cp)
    for cp in copies:
        cp.wait()

    # Slot-major layout -> each slot's rows form a contiguous, sublane-aligned
    # (B, hid) block (static slices).  Accumulate in f32, cast on store.
    x = gather_buf[pl.ds(0, B), :]
    for s in range(1, C + 1):
        x = x + gather_buf[pl.ds(s * B, B), :]
    x_ref[...] = x.astype(x_ref.dtype)


def _pvdm_proj_kernel(x_ref, outw_ref, o_ref):
    """One voc tile: (B, hid) contracted with (tn, hid) over hid -> (B, tn).

    x_ref    : VMEM (B, hid)   bf16 (or f32)
    outw_ref : VMEM (tn, hid)  bf16 (or f32)  -- contiguous tile of Out^T
    o_ref    : VMEM (B, tn)    f32            -- lane-dense output tile
    """
    o_ref[...] = lax.dot_general(
        x_ref[...], outw_ref[...],
        dimension_numbers=(((1,), (1,)), ((), ())),   # contract over hid
        preferred_element_type=jnp.float32,
    )


def pvdm_forward(doc_ids, contexts, D, W, Out, *, tn=1024,
                 weight_dtype=jnp.bfloat16):
    """doc_ids: (B,) int, contexts: (B, C) int.
    D: (doc_n, hid), W: (voc_n, hid), Out: (1, hid, voc)."""
    B = doc_ids.shape[0]
    C = contexts.shape[1]
    doc_n, hid_n = D.shape
    voc_n = W.shape[0]

    tn = min(tn, voc_n)
    assert voc_n % tn == 0, "voc_n must be a multiple of the voc tile"
    assert tn == voc_n or tn % 128 == 0, "voc tile must be lane-aligned (x128)"

    # Pre-transpose Out once to (voc, hid) and cast for the MXU stream: each voc
    # tile becomes one contiguous (tn, hid) HBM read.  (In production, store the
    # weight in this layout/dtype to avoid re-doing this per call.)
    out_w_t = jnp.swapaxes(Out.reshape(hid_n, voc_n), 0, 1).astype(weight_dtype)

    # Indices feed HBM DMAs: clamp so a bad index can't fault the DMA
    # (matches in-range behavior exactly; deviation from torch only when OOB).
    doc_ids = jnp.clip(doc_ids.astype(jnp.int32), 0, doc_n - 1)
    ctx_flat = jnp.clip(contexts.astype(jnp.int32), 0, voc_n - 1).reshape(-1)

    # ---- prologue: gather + context-sum, x = (B, hid) in weight_dtype ----
    x = pl.pallas_call(
        functools.partial(_pvdm_gather_kernel, B, C),
        out_shape=jax.ShapeDtypeStruct((B, hid_n), weight_dtype),
        grid_spec=pltpu.PrefetchScalarGridSpec(
            num_scalar_prefetch=2,          # doc_ids, flattened contexts -> SMEM
            grid=(1,),
            in_specs=[
                pl.BlockSpec(memory_space=pl.ANY),   # D (HBM)
                pl.BlockSpec(memory_space=pl.ANY),   # W (HBM)
            ],
            out_specs=pl.BlockSpec((B, hid_n), lambda i, doc, ctx: (0, 0)),
            scratch_shapes=[
                pltpu.VMEM(((C + 1) * B, hid_n), jnp.float32),
                pltpu.SemaphoreType.DMA(((C + 1) * B,)),
            ],
        ),
        compiler_params=pltpu.CompilerParams(
            dimension_semantics=("arbitrary",),
        ),
    )(doc_ids, ctx_flat, D, W)

    # ---- projection: stream Out^T tiles; voc axis parallel (megacore) ----
    wbytes = jnp.dtype(weight_dtype).itemsize
    vmem_need = (2 * tn * hid_n * wbytes        # double-buffered Out^T tiles
                 + 2 * B * tn * 4               # double-buffered output tiles
                 + 2 * B * hid_n * wbytes)      # x blocks
    # Explicit limit: raises v5e's 16 MiB scoped default, stays within v7x's
    # 64 MiB physical VMEM.
    vmem_limit = int(min(max(2 * vmem_need + (8 << 20), 32 << 20), 48 << 20))

    return pl.pallas_call(
        _pvdm_proj_kernel,
        out_shape=jax.ShapeDtypeStruct((B, voc_n), jnp.float32),
        grid_spec=pltpu.PrefetchScalarGridSpec(
            num_scalar_prefetch=0,
            grid=(voc_n // tn,),
            in_specs=[
                pl.BlockSpec((B, hid_n), lambda j: (0, 0)),   # x (resident)
                # NOTE: if tn must stay small (VMEM-constrained), add
                # pipeline_mode=pl.Buffered(3) here to deepen the Out pipeline.
                pl.BlockSpec((tn, hid_n), lambda j: (j, 0)),  # Out^T tile
            ],
            out_specs=pl.BlockSpec((B, tn), lambda j: (0, j)),
        ),
        compiler_params=pltpu.CompilerParams(
            dimension_semantics=("parallel",),   # no cross-tile state -> megacore OK
            vmem_limit_bytes=vmem_limit,
        ),
    )(x, out_w_t)


if __name__ == "__main__":
    # Small shapes consistent with the module; voc tiled into 2 grid steps,
    # B a sublane multiple, hid lane-aligned.
    B, C = 8, 3
    doc_n, voc_n, hid_n = 16, 1024, 128

    key = jax.random.PRNGKey(0)
    k_d, k_w, k_o, k_doc, k_ctx = jax.random.split(key, 5)

    D = jax.random.normal(k_d, (doc_n, hid_n), dtype=jnp.float32)
    W = jax.random.normal(k_w, (voc_n, hid_n), dtype=jnp.float32)
    # NOTE: torch init zeroes Out; use small random values here so the output
    # is non-trivial for verification (deterministic, in-script).
    Out = 0.1 * jax.random.normal(k_o, (1, hid_n, voc_n), dtype=jnp.float32)

    doc_ids = jax.random.randint(k_doc, (B,), 0, doc_n, dtype=jnp.int32)
    contexts = jax.random.randint(k_ctx, (B, C), 0, voc_n, dtype=jnp.int32)

    out = pvdm_forward(doc_ids, contexts, D, W, Out, tn=512)
    out = jax.block_until_ready(out)
    assert out.shape == (B, voc_n), out.shape

    # pure-JAX references of the PyTorch forward
    x_f32 = D[doc_ids] + jnp.sum(W[contexts], axis=1)        # (B, hid)
    ref_f32 = x_f32 @ Out[0]                                  # exact module numerics
    out_w_t = jnp.swapaxes(Out[0], 0, 1).astype(jnp.bfloat16)
    ref_bf16 = lax.dot_general(                               # same bf16-weight path
        x_f32.astype(jnp.bfloat16), out_w_t,
        dimension_numbers=(((1,), (1,)), ((), ())),
        preferred_element_type=jnp.float32,
    )

    err_tight = float(jnp.max(jnp.abs(out - ref_bf16)))
    err_exact = float(jnp.max(jnp.abs(out - ref_f32)))
    # Tight check against the bf16-weight reference (catches real bugs) ...
    assert jnp.allclose(out, ref_bf16, atol=2e-2, rtol=2e-2), err_tight
    # ... plus a looser check against the exact f32 module semantics.
    assert jnp.allclose(out, ref_f32, atol=1e-1, rtol=5e-2), err_exact
    print("KERNEL_OK")
</pallas_src>

<mosaic_0001>
module attributes {stable_mosaic.version = 11 : i64} {
  func.func @_pvdm_gather_kernel(%arg0: i32, %arg1: memref<8xi32, #tpu.memory_space<smem>>, %arg2: memref<24xi32, #tpu.memory_space<smem>>, %arg3: memref<16x128xf32, #tpu.memory_space<any>>, %arg4: memref<1024x128xf32, #tpu.memory_space<any>>, %arg5: memref<8x128xbf16, #tpu.memory_space<vmem>>, %arg6: memref<32x128xf32, #tpu.memory_space<vmem>>, %arg7: memref<32x!tpu.dma_semaphore, #tpu.memory_space<semaphore_mem>>) attributes {dimension_semantics = [#tpu.dimension_semantics<arbitrary>], iteration_bounds = array<i64: 1>, scalar_prefetch = 2 : i64, scratch_operands = 2 : i64, tpu.core_type = #tpu.core_type<tc>, window_params = [{}, {}, {pipeline_mode = #tpu.pipeline_mode<synchronous>, transform_indices = @transform_2, window_bounds = array<i64: 8, 128>}]} {
    %c0 = arith.constant 0 : index
    %0 = memref.load %arg1[%c0] : memref<8xi32, #tpu.memory_space<smem>>
    %c0_i32 = arith.constant 0 : i32
    %c0_i32_0 = arith.constant 0 : i32
    %1 = tpu.memref_slice %arg3[%0, %c0_i32_0] : memref<16x128xf32, #tpu.memory_space<any>> -> memref<1x128xf32, #tpu.memory_space<any>>
    %c0_i32_1 = arith.constant 0 : i32
    %c0_i32_2 = arith.constant 0 : i32
    %2 = tpu.memref_slice %arg6[%c0_i32_1, %c0_i32_2] : memref<32x128xf32, #tpu.memory_space<vmem>> -> memref<1x128xf32, #tpu.memory_space<vmem>>
    %3 = tpu.memref_slice %arg7[%c0_i32] : memref<32x!tpu.dma_semaphore, #tpu.memory_space<semaphore_mem>> -> memref<1x!tpu.dma_semaphore, #tpu.memory_space<semaphore_mem>>
    %4 = tpu.memref_squeeze %3 : memref<1x!tpu.dma_semaphore, #tpu.memory_space<semaphore_mem>> -> memref<!tpu.dma_semaphore, #tpu.memory_space<semaphore_mem>>
    tpu.enqueue_dma source(%1 : memref<1x128xf32, #tpu.memory_space<any>>) target(%2 : memref<1x128xf32, #tpu.memory_space<vmem>>) target_semaphore(%4 : memref<!tpu.dma_semaphore, #tpu.memory_space<semaphore_mem>>)
    %c0_3 = arith.constant 0 : index
    %5 = memref.load %arg2[%c0_3] : memref<24xi32, #tpu.memory_space<smem>>
    %c8_i32 = arith.constant 8 : i32
    %c0_i32_4 = arith.constant 0 : i32
    %6 = tpu.memref_slice %arg4[%5, %c0_i32_4] : memref<1024x128xf32, #tpu.memory_space<any>> -> memref<1x128xf32, #tpu.memory_space<any>>
    %c8_i32_5 = arith.constant 8 : i32
    %c0_i32_6 = arith.constant 0 : i32
    %7 = tpu.memref_slice %arg6[%c8_i32_5, %c0_i32_6] : memref<32x128xf32, #tpu.memory_space<vmem>> -> memref<1x128xf32, #tpu.memory_space<vmem>>
    %8 = tpu.memref_slice %arg7[%c8_i32] : memref<32x!tpu.dma_semaphore, #tpu.memory_space<semaphore_mem>> -> memref<1x!tpu.dma_semaphore, #tpu.memory_space<semaphore_mem>>
    %9 = tpu.memref_squeeze %8 : memref<1x!tpu.dma_semaphore, #tpu.memory_space<semaphore_mem>> -> memref<!tpu.dma_semaphore, #tpu.memory_space<semaphore_mem>>
    tpu.enqueue_dma source(%6 : memref<1x128xf32, #tpu.memory_space<any>>) target(%7 : memref<1x128xf32, #tpu.memory_space<vmem>>) target_semaphore(%9 : memref<!tpu.dma_semaphore, #tpu.memory_space<semaphore_mem>>)
    %c1 = arith.constant 1 : index
    %10 = memref.load %arg2[%c1] : memref<24xi32, #tpu.memory_space<smem>>
    %c16_i32 = arith.constant 16 : i32
    %c0_i32_7 = arith.constant 0 : i32
    %11 = tpu.memref_slice %arg4[%10, %c0_i32_7] : memref<1024x128xf32, #tpu.memory_space<any>> -> memref<1x128xf32, #tpu.memory_space<any>>
    %c16_i32_8 = arith.constant 16 : i32
    %c0_i32_9 = arith.constant 0 : i32
    %12 = tpu.memref_slice %arg6[%c16_i32_8, %c0_i32_9] : memref<32x128xf32, #tpu.memory_space<vmem>> -> memref<1x128xf32, #tpu.memory_space<vmem>>
    %13 = tpu.memref_slice %arg7[%c16_i32] : memref<32x!tpu.dma_semaphore, #tpu.memory_space<semaphore_mem>> -> memref<1x!tpu.dma_semaphore, #tpu.memory_space<semaphore_mem>>
    %14 = tpu.memref_squeeze %13 : memref<1x!tpu.dma_semaphore, #tpu.memory_space<semaphore_mem>> -> memref<!tpu.dma_semaphore, #tpu.memory_space<semaphore_mem>>
    tpu.enqueue_dma source(%11 : memref<1x128xf32, #tpu.memory_space<any>>) target(%12 : memref<1x128xf32, #tpu.memory_space<vmem>>) target_semaphore(%14 : memref<!tpu.dma_semaphore, #tpu.memory_space<semaphore_mem>>)
    %c2 = arith.constant 2 : index
    %15 = memref.load %arg2[%c2] : memref<24xi32, #tpu.memory_space<smem>>
    %c24_i32 = arith.constant 24 : i32
    %c0_i32_10 = arith.constant 0 : i32
    %16 = tpu.memref_slice %arg4[%15, %c0_i32_10] : memref<1024x128xf32, #tpu.memory_space<any>> -> memref<1x128xf32, #tpu.memory_space<any>>
    %c24_i32_11 = arith.constant 24 : i32
    %c0_i32_12 = arith.constant 0 : i32
    %17 = tpu.memref_slice %arg6[%c24_i32_11, %c0_i32_12] : memref<32x128xf32, #tpu.memory_space<vmem>> -> memref<1x128xf32, #tpu.memory_space<vmem>>
    %18 = tpu.memref_slice %arg7[%c24_i32] : memref<32x!tpu.dma_semaphore, #tpu.memory_space<semaphore_mem>> -> memref<1x!tpu.dma_semaphore, #tpu.memory_space<semaphore_mem>>
    %19 = tpu.memref_squeeze %18 : memref<1x!tpu.dma_semaphore, #tpu.memory_space<semaphore_mem>> -> memref<!tpu.dma_semaphore, #tpu.memory_space<semaphore_mem>>
    tpu.enqueue_dma source(%16 : memref<1x128xf32, #tpu.memory_space<any>>) target(%17 : memref<1x128xf32, #tpu.memory_space<vmem>>) target_semaphore(%19 : memref<!tpu.dma_semaphore, #tpu.memory_space<semaphore_mem>>)
    %c1_13 = arith.constant 1 : index
    %20 = memref.load %arg1[%c1_13] : memref<8xi32, #tpu.memory_space<smem>>
    %c1_i32 = arith.constant 1 : i32
    %c0_i32_14 = arith.constant 0 : i32
    %21 = tpu.memref_slice %arg3[%20, %c0_i32_14] : memref<16x128xf32, #tpu.memory_space<any>> -> memref<1x128xf32, #tpu.memory_space<any>>
    %c1_i32_15 = arith.constant 1 : i32
    %c0_i32_16 = arith.constant 0 : i32
    %22 = tpu.memref_slice %arg6[%c1_i32_15, %c0_i32_16] : memref<32x128xf32, #tpu.memory_space<vmem>> -> memref<1x128xf32, #tpu.memory_space<vmem>>
    %23 = tpu.memref_slice %arg7[%c1_i32] : memref<32x!tpu.dma_semaphore, #tpu.memory_space<semaphore_mem>> -> memref<1x!tpu.dma_semaphore, #tpu.memory_space<semaphore_mem>>
    %24 = tpu.memref_squeeze %23 : memref<1x!tpu.dma_semaphore, #tpu.memory_space<semaphore_mem>> -> memref<!tpu.dma_semaphore, #tpu.memory_space<semaphore_mem>>
    tpu.enqueue_dma source(%21 : memref<1x128xf32, #tpu.memory_space<any>>) target(%22 : memref<1x128xf32, #tpu.memory_space<vmem>>) target_semaphore(%24 : memref<!tpu.dma_semaphore, #tpu.memory_space<semaphore_mem>>)
    %c3 = arith.constant 3 : index
    %25 = memref.load %arg2[%c3] : memref<24xi32, #tpu.memory_space<smem>>
    %c9_i32 = arith.constant 9 : i32
    %c0_i32_17 = arith.constant 0 : i32
    %26 = tpu.memref_slice %arg4[%25, %c0_i32_17] : memref<1024x128xf32, #tpu.memory_space<any>> -> memref<1x128xf32, #tpu.memory_space<any>>
    %c9_i32_18 = arith.constant 9 : i32
    %c0_i32_19 = arith.constant 0 : i32
    %27 = tpu.memref_slice %arg6[%c9_i32_18, %c0_i32_19] : memref<32x128xf32, #tpu.memory_space<vmem>> -> memref<1x128xf32, #tpu.memory_space<vmem>>
    %28 = tpu.memref_slice %arg7[%c9_i32] : memref<32x!tpu.dma_semaphore, #tpu.memory_space<semaphore_mem>> -> memref<1x!tpu.dma_semaphore, #tpu.memory_space<semaphore_mem>>
    %29 = tpu.memref_squeeze %28 : memref<1x!tpu.dma_semaphore, #tpu.memory_space<semaphore_mem>> -> memref<!tpu.dma_semaphore, #tpu.memory_space<semaphore_mem>>
    tpu.enqueue_dma source(%26 : memref<1x128xf32, #tpu.memory_space<any>>) target(%27 : memref<1x128xf32, #tpu.memory_space<vmem>>) target_semaphore(%29 : memref<!tpu.dma_semaphore, #tpu.memory_space<semaphore_mem>>)
    %c4 = arith.constant 4 : index
    %30 = memref.load %arg2[%c4] : memref<24xi32, #tpu.memory_space<smem>>
    %c17_i32 = arith.constant 17 : i32
    %c0_i32_20 = arith.constant 0 : i32
    %31 = tpu.memref_slice %arg4[%30, %c0_i32_20] : memref<1024x128xf32, #tpu.memory_space<any>> -> memref<1x128xf32, #tpu.memory_space<any>>
    %c17_i32_21 = arith.constant 17 : i32
    %c0_i32_22 = arith.constant 0 : i32
    %32 = tpu.memref_slice %arg6[%c17_i32_21, %c0_i32_22] : memref<32x128xf32, #tpu.memory_space<vmem>> -> memref<1x128xf32, #tpu.memory_space<vmem>>
    %33 = tpu.memref_slice %arg7[%c17_i32] : memref<32x!tpu.dma_semaphore, #tpu.memory_space<semaphore_mem>> -> memref<1x!tpu.dma_semaphore, #tpu.memory_space<semaphore_mem>>
    %34 = tpu.memref_squeeze %33 : memref<1x!tpu.dma_semaphore, #tpu.memory_space<semaphore_mem>> -> memref<!tpu.dma_semaphore, #tpu.memory_space<semaphore_mem>>
    tpu.enqueue_dma source(%31 : memref<1x128xf32, #tpu.memory_space<any>>) target(%32 : memref<1x128xf32, #tpu.memory_space<vmem>>) target_semaphore(%34 : memref<!tpu.dma_semaphore, #tpu.memory_space<semaphore_mem>>)
    %c5 = arith.constant 5 : index
    %35 = memref.load %arg2[%c5] : memref<24xi32, #tpu.memory_space<smem>>
    %c25_i32 = arith.constant 25 : i32
    %c0_i32_23 = arith.constant 0 : i32
    %36 = tpu.memref_slice %arg4[%35, %c0_i32_23] : memref<1024x128xf32, #tpu.memory_space<any>> -> memref<1x128xf32, #tpu.memory_space<any>>
    %c25_i32_24 = arith.constant 25 : i32
    %c0_i32_25 = arith.constant 0 : i32
    %37 = tpu.memref_slice %arg6[%c25_i32_24, %c0_i32_25] : memref<32x128xf32, #tpu.memory_space<vmem>> -> memref<1x128xf32, #tpu.memory_space<vmem>>
    %38 = tpu.memref_slice %arg7[%c25_i32] : memref<32x!tpu.dma_semaphore, #tpu.memory_space<semaphore_mem>> -> memref<1x!tpu.dma_semaphore, #tpu.memory_space<semaphore_mem>>
    %39 = tpu.memref_squeeze %38 : memref<1x!tpu.dma_semaphore, #tpu.memory_space<semaphore_mem>> -> memref<!tpu.dma_semaphore, #tpu.memory_space<semaphore_mem>>
    tpu.enqueue_dma source(%36 : memref<1x128xf32, #tpu.memory_space<any>>) target(%37 : memref<1x128xf32, #tpu.memory_space<vmem>>) target_semaphore(%39 : memref<!tpu.dma_semaphore, #tpu.memory_space<semaphore_mem>>)
    %c2_26 = arith.constant 2 : index
    %40 = memref.load %arg1[%c2_26] : memref<8xi32, #tpu.memory_space<smem>>
    %c2_i32 = arith.constant 2 : i32
    %c0_i32_27 = arith.constant 0 : i32
    %41 = tpu.memref_slice %arg3[%40, %c0_i32_27] : memref<16x128xf32, #tpu.memory_space<any>> -> memref<1x128xf32, #tpu.memory_space<any>>
    %c2_i32_28 = arith.constant 2 : i32
    %c0_i32_29 = arith.constant 0 : i32
    %42 = tpu.memref_slice %arg6[%c2_i32_28, %c0_i32_29] : memref<32x128xf32, #tpu.memory_space<vmem>> -> memref<1x128xf32, #tpu.memory_space<vmem>>
    %43 = tpu.memref_slice %arg7[%c2_i32] : memref<32x!tpu.dma_semaphore, #tpu.memory_space<semaphore_mem>> -> memref<1x!tpu.dma_semaphore, #tpu.memory_space<semaphore_mem>>
    %44 = tpu.memref_squeeze %43 : memref<1x!tpu.dma_semaphore, #tpu.memory_space<semaphore_mem>> -> memref<!tpu.dma_semaphore, #tpu.memory_space<semaphore_mem>>
    tpu.enqueue_dma source(%41 : memref<1x128xf32, #tpu.memory_space<any>>) target(%42 : memref<1x128xf32, #tpu.memory_space<vmem>>) target_semaphore(%44 : memref<!tpu.dma_semaphore, #tpu.memory_space<semaphore_mem>>)
    %c6 = arith.constant 6 : index
    %45 = memref.load %arg2[%c6] : memref<24xi32, #tpu.memory_space<smem>>
    %c10_i32 = arith.constant 10 : i32
    %c0_i32_30 = arith.constant 0 : i32
    %46 = tpu.memref_slice %arg4[%45, %c0_i32_30] : memref<1024x128xf32, #tpu.memory_space<any>> -> memref<1x128xf32, #tpu.memory_space<any>>
    %c10_i32_31 = arith.constant 10 : i32
    %c0_i32_32 = arith.constant 0 : i32
    %47 = tpu.memref_slice %arg6[%c10_i32_31, %c0_i32_32] : memref<32x128xf32, #tpu.memory_space<vmem>> -> memref<1x128xf32, #tpu.memory_space<vmem>>
    %48 = tpu.memref_slice %arg7[%c10_i32] : memref<32x!tpu.dma_semaphore, #tpu.memory_space<semaphore_mem>> -> memref<1x!tpu.dma_semaphore, #tpu.memory_space<semaphore_mem>>
    %49 = tpu.memref_squeeze %48 : memref<1x!tpu.dma_semaphore, #tpu.memory_space<semaphore_mem>> -> memref<!tpu.dma_semaphore, #tpu.memory_space<semaphore_mem>>
    tpu.enqueue_dma source(%46 : memref<1x128xf32, #tpu.memory_space<any>>) target(%47 : memref<1x128xf32, #tpu.memory_space<vmem>>) target_semaphore(%49 : memref<!tpu.dma_semaphore, #tpu.memory_space<semaphore_mem>>)
    %c7 = arith.constant 7 : index
    %50 = memref.load %arg2[%c7] : memref<24xi32, #tpu.memory_space<smem>>
    %c18_i32 = arith.constant 18 : i32
    %c0_i32_33 = arith.constant 0 : i32
    %51 = tpu.memref_slice %arg4[%50, %c0_i32_33] : memref<1024x128xf32, #tpu.memory_space<any>> -> memref<1x128xf32, #tpu.memory_space<any>>
    %c18_i32_34 = arith.constant 18 : i32
    %c0_i32_35 = arith.constant 0 : i32
    %52 = tpu.memref_slice %arg6[%c18_i32_34, %c0_i32_35] : memref<32x128xf32, #tpu.memory_space<vmem>> -> memref<1x128xf32, #tpu.memory_space<vmem>>
    %53 = tpu.memref_slice %arg7[%c18_i32] : memref<32x!tpu.dma_semaphore, #tpu.memory_space<semaphore_mem>> -> memref<1x!tpu.dma_semaphore, #tpu.memory_space<semaphore_mem>>
    %54 = tpu.memref_squeeze %53 : memref<1x!tpu.dma_semaphore, #tpu.memory_space<semaphore_mem>> -> memref<!tpu.dma_semaphore, #tpu.memory_space<semaphore_mem>>
    tpu.enqueue_dma source(%51 : memref<1x128xf32, #tpu.memory_space<any>>) target(%52 : memref<1x128xf32, #tpu.memory_space<vmem>>) target_semaphore(%54 : memref<!tpu.dma_semaphore, #tpu.memory_space<semaphore_mem>>)
    %c8 = arith.constant 8 : index
    %55 = memref.load %arg2[%c8] : memref<24xi32, #tpu.memory_space<smem>>
    %c26_i32 = arith.constant 26 : i32
    %c0_i32_36 = arith.constant 0 : i32
    %56 = tpu.memref_slice %arg4[%55, %c0_i32_36] : memref<1024x128xf32, #tpu.memory_space<any>> -> memref<1x128xf32, #tpu.memory_space<any>>
    %c26_i32_37 = arith.constant 26 : i32
    %c0_i32_38 = arith.constant 0 : i32
    %57 = tpu.memref_slice %arg6[%c26_i32_37, %c0_i32_38] : memref<32x128xf32, #tpu.memory_space<vmem>> -> memref<1x128xf32, #tpu.memory_space<vmem>>
    %58 = tpu.memref_slice %arg7[%c26_i32] : memref<32x!tpu.dma_semaphore, #tpu.memory_space<semaphore_mem>> -> memref<1x!tpu.dma_semaphore, #tpu.memory_space<semaphore_mem>>
    %59 = tpu.memref_squeeze %58 : memref<1x!tpu.dma_semaphore, #tpu.memory_space<semaphore_mem>> -> memref<!tpu.dma_semaphore, #tpu.memory_space<semaphore_mem>>
    tpu.enqueue_dma source(%56 : memref<1x128xf32, #tpu.memory_space<any>>) target(%57 : memref<1x128xf32, #tpu.memory_space<vmem>>) target_semaphore(%59 : memref<!tpu.dma_semaphore, #tpu.memory_space<semaphore_mem>>)
    %c3_39 = arith.constant 3 : index
    %60 = memref.load %arg1[%c3_39] : memref<8xi32, #tpu.memory_space<smem>>
    %c3_i32 = arith.constant 3 : i32
    %c0_i32_40 = arith.constant 0 : i32
    %61 = tpu.memref_slice %arg3[%60, %c0_i32_40] : memref<16x128xf32, #tpu.memory_space<any>> -> memref<1x128xf32, #tpu.memory_space<any>>
    %c3_i32_41 = arith.constant 3 : i32
    %c0_i32_42 = arith.constant 0 : i32
    %62 = tpu.memref_slice %arg6[%c3_i32_41, %c0_i32_42] : memref<32x128xf32, #tpu.memory_space<vmem>> -> memref<1x128xf32, #tpu.memory_space<vmem>>
    %63 = tpu.memref_slice %arg7[%c3_i32] : memref<32x!tpu.dma_semaphore, #tpu.memory_space<semaphore_mem>> -> memref<1x!tpu.dma_semaphore, #tpu.memory_space<semaphore_mem>>
    %64 = tpu.memref_squeeze %63 : memref<1x!tpu.dma_semaphore, #tpu.memory_space<semaphore_mem>> -> memref<!tpu.dma_semaphore, #tpu.memory_space<semaphore_mem>>
    tpu.enqueue_dma source(%61 : memref<1x128xf32, #tpu.memory_space<any>>) target(%62 : memref<1x128xf32, #tpu.memory_space<vmem>>) target_semaphore(%64 : memref<!tpu.dma_semaphore, #tpu.memory_space<semaphore_mem>>)
    %c9 = arith.constant 9 : index
    %65 = memref.load %arg2[%c9] : memref<24xi32, #tpu.memory_space<smem>>
    %c11_i32 = arith.constant 11 : i32
    %c0_i32_43 = arith.constant 0 : i32
    %66 = tpu.memref_slice %arg4[%65, %c0_i32_43] : memref<1024x128xf32, #tpu.memory_space<any>> -> memref<1x128xf32, #tpu.memory_space<any>>
    %c11_i32_44 = arith.constant 11 : i32
    %c0_i32_45 = arith.constant 0 : i32
    %67 = tpu.memref_slice %arg6[%c11_i32_44, %c0_i32_45] : memref<32x128xf32, #tpu.memory_space<vmem>> -> memref<1x128xf32, #tpu.memory_space<vmem>>
    %68 = tpu.memref_slice %arg7[%c11_i32] : memref<32x!tpu.dma_semaphore, #tpu.memory_space<semaphore_mem>> -> memref<1x!tpu.dma_semaphore, #tpu.memory_space<semaphore_mem>>
    %69 = tpu.memref_squeeze %68 : memref<1x!tpu.dma_semaphore, #tpu.memory_space<semaphore_mem>> -> memref<!tpu.dma_semaphore, #tpu.memory_space<semaphore_mem>>
    tpu.enqueue_dma source(%66 : memref<1x128xf32, #tpu.memory_space<any>>) target(%67 : memref<1x128xf32, #tpu.memory_space<vmem>>) target_semaphore(%69 : memref<!tpu.dma_semaphore, #tpu.memory_space<semaphore_mem>>)
    %c10 = arith.constant 10 : index
    %70 = memref.load %arg2[%c10] : memref<24xi32, #tpu.memory_space<smem>>
    %c19_i32 = arith.constant 19 : i32
    %c0_i32_46 = arith.constant 0 : i32
    %71 = tpu.memref_slice %arg4[%70, %c0_i32_46] : memref<1024x128xf32, #tpu.memory_space<any>> -> memref<1x128xf32, #tpu.memory_space<any>>
    %c19_i32_47 = arith.constant 19 : i32
    %c0_i32_48 = arith.constant 0 : i32
    %72 = tpu.memref_slice %arg6[%c19_i32_47, %c0_i32_48] : memref<32x128xf32, #tpu.memory_space<vmem>> -> memref<1x128xf32, #tpu.memory_space<vmem>>
    %73 = tpu.memref_slice %arg7[%c19_i32] : memref<32x!tpu.dma_semaphore, #tpu.memory_space<semaphore_mem>> -> memref<1x!tpu.dma_semaphore, #tpu.memory_space<semaphore_mem>>
    %74 = tpu.memref_squeeze %73 : memref<1x!tpu.dma_semaphore, #tpu.memory_space<semaphore_mem>> -> memref<!tpu.dma_semaphore, #tpu.memory_space<semaphore_mem>>
    tpu.enqueue_dma source(%71 : memref<1x128xf32, #tpu.memory_space<any>>) target(%72 : memref<1x128xf32, #tpu.memory_space<vmem>>) target_semaphore(%74 : memref<!tpu.dma_semaphore, #tpu.memory_space<semaphore_mem>>)
    %c11 = arith.constant 11 : index
    %75 = memref.load %arg2[%c11] : memref<24xi32, #tpu.memory_space<smem>>
    %c27_i32 = arith.constant 27 : i32
    %c0_i32_49 = arith.constant 0 : i32
    %76 = tpu.memref_slice %arg4[%75, %c0_i32_49] : memref<1024x128xf32, #tpu.memory_space<any>> -> memref<1x128xf32, #tpu.memory_space<any>>
    %c27_i32_50 = arith.constant 27 : i32
    %c0_i32_51 = arith.constant 0 : i32
    %77 = tpu.memref_slice %arg6[%c27_i32_50, %c0_i32_51] : memref<32x128xf32, #tpu.memory_space<vmem>> -> memref<1x128xf32, #tpu.memory_space<vmem>>
    %78 = tpu.memref_slice %arg7[%c27_i32] : memref<32x!tpu.dma_semaphore, #tpu.memory_space<semaphore_mem>> -> memref<1x!tpu.dma_semaphore, #tpu.memory_space<semaphore_mem>>
    %79 = tpu.memref_squeeze %78 : memref<1x!tpu.dma_semaphore, #tpu.memory_space<semaphore_mem>> -> memref<!tpu.dma_semaphore, #tpu.memory_space<semaphore_mem>>
    tpu.enqueue_dma source(%76 : memref<1x128xf32, #tpu.memory_space<any>>) target(%77 : memref<1x128xf32, #tpu.memory_space<vmem>>) target_semaphore(%79 : memref<!tpu.dma_semaphore, #tpu.memory_space<semaphore_mem>>)
    %c4_52 = arith.constant 4 : index
    %80 = memref.load %arg1[%c4_52] : memref<8xi32, #tpu.memory_space<smem>>
    %c4_i32 = arith.constant 4 : i32
    %c0_i32_53 = arith.constant 0 : i32
    %81 = tpu.memref_slice %arg3[%80, %c0_i32_53] : memref<16x128xf32, #tpu.memory_space<any>> -> memref<1x128xf32, #tpu.memory_space<any>>
    %c4_i32_54 = arith.constant 4 : i32
    %c0_i32_55 = arith.constant 0 : i32
    %82 = tpu.memref_slice %arg6[%c4_i32_54, %c0_i32_55] : memref<32x128xf32, #tpu.memory_space<vmem>> -> memref<1x128xf32, #tpu.memory_space<vmem>>
    %83 = tpu.memref_slice %arg7[%c4_i32] : memref<32x!tpu.dma_semaphore, #tpu.memory_space<semaphore_mem>> -> memref<1x!tpu.dma_semaphore, #tpu.memory_space<semaphore_mem>>
    %84 = tpu.memref_squeeze %83 : memref<1x!tpu.dma_semaphore, #tpu.memory_space<semaphore_mem>> -> memref<!tpu.dma_semaphore, #tpu.memory_space<semaphore_mem>>
    tpu.enqueue_dma source(%81 : memref<1x128xf32, #tpu.memory_space<any>>) target(%82 : memref<1x128xf32, #tpu.memory_space<vmem>>) target_semaphore(%84 : memref<!tpu.dma_semaphore, #tpu.memory_space<semaphore_mem>>)
    %c12 = arith.constant 12 : index
    %85 = memref.load %arg2[%c12] : memref<24xi32, #tpu.memory_space<smem>>
    %c12_i32 = arith.constant 12 : i32
    %c0_i32_56 = arith.constant 0 : i32
    %86 = tpu.memref_slice %arg4[%85, %c0_i32_56] : memref<1024x128xf32, #tpu.memory_space<any>> -> memref<1x128xf32, #tpu.memory_space<any>>
    %c12_i32_57 = arith.constant 12 : i32
    %c0_i32_58 = arith.constant 0 : i32
    %87 = tpu.memref_slice %arg6[%c12_i32_57, %c0_i32_58] : memref<32x128xf32, #tpu.memory_space<vmem>> -> memref<1x128xf32, #tpu.memory_space<vmem>>
    %88 = tpu.memref_slice %arg7[%c12_i32] : memref<32x!tpu.dma_semaphore, #tpu.memory_space<semaphore_mem>> -> memref<1x!tpu.dma_semaphore, #tpu.memory_space<semaphore_mem>>
    %89 = tpu.memref_squeeze %88 : memref<1x!tpu.dma_semaphore, #tpu.memory_space<semaphore_mem>> -> memref<!tpu.dma_semaphore, #tpu.memory_space<semaphore_mem>>
    tpu.enqueue_dma source(%86 : memref<1x128xf32, #tpu.memory_space<any>>) target(%87 : memref<1x128xf32, #tpu.memory_space<vmem>>) target_semaphore(%89 : memref<!tpu.dma_semaphore, #tpu.memory_space<semaphore_mem>>)
    %c13 = arith.constant 13 : index
    %90 = memref.load %arg2[%c13] : memref<24xi32, #tpu.memory_space<smem>>
    %c20_i32 = arith.constant 20 : i32
    %c0_i32_59 = arith.constant 0 : i32
    %91 = tpu.memref_slice %arg4[%90, %c0_i32_59] : memref<1024x128xf32, #tpu.memory_space<any>> -> memref<1x128xf32, #tpu.memory_space<any>>
    %c20_i32_60 = arith.constant 20 : i32
    %c0_i32_61 = arith.constant 0 : i32
    %92 = tpu.memref_slice %arg6[%c20_i32_60, %c0_i32_61] : memref<32x128xf32, #tpu.memory_space<vmem>> -> memref<1x128xf32, #tpu.memory_space<vmem>>
    %93 = tpu.memref_slice %arg7[%c20_i32] : memref<32x!tpu.dma_semaphore, #tpu.memory_space<semaphore_mem>> -> memref<1x!tpu.dma_semaphore, #tpu.memory_space<semaphore_mem>>
    %94 = tpu.memref_squeeze %93 : memref<1x!tpu.dma_semaphore, #tpu.memory_space<semaphore_mem>> -> memref<!tpu.dma_semaphore, #tpu.memory_space<semaphore_mem>>
    tpu.enqueue_dma source(%91 : memref<1x128xf32, #tpu.memory_space<any>>) target(%92 : memref<1x128xf32, #tpu.memory_space<vmem>>) target_semaphore(%94 : memref<!tpu.dma_semaphore, #tpu.memory_space<semaphore_mem>>)
    %c14 = arith.constant 14 : index
    %95 = memref.load %arg2[%c14] : memref<24xi32, #tpu.memory_space<smem>>
    %c28_i32 = arith.constant 28 : i32
    %c0_i32_62 = arith.constant 0 : i32
    %96 = tpu.memref_slice %arg4[%95, %c0_i32_62] : memref<1024x128xf32, #tpu.memory_space<any>> -> memref<1x128xf32, #tpu.memory_space<any>>
    %c28_i32_63 = arith.constant 28 : i32
    %c0_i32_64 = arith.constant 0 : i32
    %97 = tpu.memref_slice %arg6[%c28_i32_63, %c0_i32_64] : memref<32x128xf32, #tpu.memory_space<vmem>> -> memref<1x128xf32, #tpu.memory_space<vmem>>
    %98 = tpu.memref_slice %arg7[%c28_i32] : memref<32x!tpu.dma_semaphore, #tpu.memory_space<semaphore_mem>> -> memref<1x!tpu.dma_semaphore, #tpu.memory_space<semaphore_mem>>
    %99 = tpu.memref_squeeze %98 : memref<1x!tpu.dma_semaphore, #tpu.memory_space<semaphore_mem>> -> memref<!tpu.dma_semaphore, #tpu.memory_space<semaphore_mem>>
    tpu.enqueue_dma source(%96 : memref<1x128xf32, #tpu.memory_space<any>>) target(%97 : memref<1x128xf32, #tpu.memory_space<vmem>>) target_semaphore(%99 : memref<!tpu.dma_semaphore, #tpu.memory_space<semaphore_mem>>)
    %c5_65 = arith.constant 5 : index
    %100 = memref.load %arg1[%c5_65] : memref<8xi32, #tpu.memory_space<smem>>
    %c5_i32 = arith.constant 5 : i32
    %c0_i32_66 = arith.constant 0 : i32
    %101 = tpu.memref_slice %arg3[%100, %c0_i32_66] : memref<16x128xf32, #tpu.memory_space<any>> -> memref<1x128xf32, #tpu.memory_space<any>>
    %c5_i32_67 = arith.constant 5 : i32
    %c0_i32_68 = arith.constant 0 : i32
    %102 = tpu.memref_slice %arg6[%c5_i32_67, %c0_i32_68] : memref<32x128xf32, #tpu.memory_space<vmem>> -> memref<1x128xf32, #tpu.memory_space<vmem>>
    %103 = tpu.memref_slice %arg7[%c5_i32] : memref<32x!tpu.dma_semaphore, #tpu.memory_space<semaphore_mem>> -> memref<1x!tpu.dma_semaphore, #tpu.memory_space<semaphore_mem>>
    %104 = tpu.memref_squeeze %103 : memref<1x!tpu.dma_semaphore, #tpu.memory_space<semaphore_mem>> -> memref<!tpu.dma_semaphore, #tpu.memory_space<semaphore_mem>>
    tpu.enqueue_dma source(%101 : memref<1x128xf32, #tpu.memory_space<any>>) target(%102 : memref<1x128xf32, #tpu.memory_space<vmem>>) target_semaphore(%104 : memref<!tpu.dma_semaphore, #tpu.memory_space<semaphore_mem>>)
    %c15 = arith.constant 15 : index
    %105 = memref.load %arg2[%c15] : memref<24xi32, #tpu.memory_space<smem>>
    %c13_i32 = arith.constant 13 : i32
    %c0_i32_69 = arith.constant 0 : i32
    %106 = tpu.memref_slice %arg4[%105, %c0_i32_69] : memref<1024x128xf32, #tpu.memory_space<any>> -> memref<1x128xf32, #tpu.memory_space<any>>
    %c13_i32_70 = arith.constant 13 : i32
    %c0_i32_71 = arith.constant 0 : i32
    %107 = tpu.memref_slice %arg6[%c13_i32_70, %c0_i32_71] : memref<32x128xf32, #tpu.memory_space<vmem>> -> memref<1x128xf32, #tpu.memory_space<vmem>>
    %108 = tpu.memref_slice %arg7[%c13_i32] : memref<32x!tpu.dma_semaphore, #tpu.memory_space<semaphore_mem>> -> memref<1x!tpu.dma_semaphore, #tpu.memory_space<semaphore_mem>>
    %109 = tpu.memref_squeeze %108 : memref<1x!tpu.dma_semaphore, #tpu.memory_space<semaphore_mem>> -> memref<!tpu.dma_semaphore, #tpu.memory_space<semaphore_mem>>
    tpu.enqueue_dma source(%106 : memref<1x128xf32, #tpu.memory_space<any>>) target(%107 : memref<1x128xf32, #tpu.memory_space<vmem>>) target_semaphore(%109 : memref<!tpu.dma_semaphore, #tpu.memory_space<semaphore_mem>>)
    %c16 = arith.constant 16 : index
    %110 = memref.load %arg2[%c16] : memref<24xi32, #tpu.memory_space<smem>>
    %c21_i32 = arith.constant 21 : i32
    %c0_i32_72 = arith.constant 0 : i32
    %111 = tpu.memref_slice %arg4[%110, %c0_i32_72] : memref<1024x128xf32, #tpu.memory_space<any>> -> memref<1x128xf32, #tpu.memory_space<any>>
    %c21_i32_73 = arith.constant 21 : i32
    %c0_i32_74 = arith.constant 0 : i32
    %112 = tpu.memref_slice %arg6[%c21_i32_73, %c0_i32_74] : memref<32x128xf32, #tpu.memory_space<vmem>> -> memref<1x128xf32, #tpu.memory_space<vmem>>
    %113 = tpu.memref_slice %arg7[%c21_i32] : memref<32x!tpu.dma_semaphore, #tpu.memory_space<semaphore_mem>> -> memref<1x!tpu.dma_semaphore, #tpu.memory_space<semaphore_mem>>
    %114 = tpu.memref_squeeze %113 : memref<1x!tpu.dma_semaphore, #tpu.memory_space<semaphore_mem>> -> memref<!tpu.dma_semaphore, #tpu.memory_space<semaphore_mem>>
    tpu.enqueue_dma source(%111 : memref<1x128xf32, #tpu.memory_space<any>>) target(%112 : memref<1x128xf32, #tpu.memory_space<vmem>>) target_semaphore(%114 : memref<!tpu.dma_semaphore, #tpu.memory_space<semaphore_mem>>)
    %c17 = arith.constant 17 : index
    %115 = memref.load %arg2[%c17] : memref<24xi32, #tpu.memory_space<smem>>
    %c29_i32 = arith.constant 29 : i32
    %c0_i32_75 = arith.constant 0 : i32
    %116 = tpu.memref_slice %arg4[%115, %c0_i32_75] : memref<1024x128xf32, #tpu.memory_space<any>> -> memref<1x128xf32, #tpu.memory_space<any>>
    %c29_i32_76 = arith.constant 29 : i32
    %c0_i32_77 = arith.constant 0 : i32
    %117 = tpu.memref_slice %arg6[%c29_i32_76, %c0_i32_77] : memref<32x128xf32, #tpu.memory_space<vmem>> -> memref<1x128xf32, #tpu.memory_space<vmem>>
    %118 = tpu.memref_slice %arg7[%c29_i32] : memref<32x!tpu.dma_semaphore, #tpu.memory_space<semaphore_mem>> -> memref<1x!tpu.dma_semaphore, #tpu.memory_space<semaphore_mem>>
    %119 = tpu.memref_squeeze %118 : memref<1x!tpu.dma_semaphore, #tpu.memory_space<semaphore_mem>> -> memref<!tpu.dma_semaphore, #tpu.memory_space<semaphore_mem>>
    tpu.enqueue_dma source(%116 : memref<1x128xf32, #tpu.memory_space<any>>) target(%117 : memref<1x128xf32, #tpu.memory_space<vmem>>) target_semaphore(%119 : memref<!tpu.dma_semaphore, #tpu.memory_space<semaphore_mem>>)
    %c6_78 = arith.constant 6 : index
    %120 = memref.load %arg1[%c6_78] : memref<8xi32, #tpu.memory_space<smem>>
    %c6_i32 = arith.constant 6 : i32
    %c0_i32_79 = arith.constant 0 : i32
    %121 = tpu.memref_slice %arg3[%120, %c0_i32_79] : memref<16x128xf32, #tpu.memory_space<any>> -> memref<1x128xf32, #tpu.memory_space<any>>
    %c6_i32_80 = arith.constant 6 : i32
    %c0_i32_81 = arith.constant 0 : i32
    %122 = tpu.memref_slice %arg6[%c6_i32_80, %c0_i32_81] : memref<32x128xf32, #tpu.memory_space<vmem>> -> memref<1x128xf32, #tpu.memory_space<vmem>>
    %123 = tpu.memref_slice %arg7[%c6_i32] : memref<32x!tpu.dma_semaphore, #tpu.memory_space<semaphore_mem>> -> memref<1x!tpu.dma_semaphore, #tpu.memory_space<semaphore_mem>>
    %124 = tpu.memref_squeeze %123 : memref<1x!tpu.dma_semaphore, #tpu.memory_space<semaphore_mem>> -> memref<!tpu.dma_semaphore, #tpu.memory_space<semaphore_mem>>
    tpu.enqueue_dma source(%121 : memref<1x128xf32, #tpu.memory_space<any>>) target(%122 : memref<1x128xf32, #tpu.memory_space<vmem>>) target_semaphore(%124 : memref<!tpu.dma_semaphore, #tpu.memory_space<semaphore_mem>>)
    %c18 = arith.constant 18 : index
    %125 = memref.load %arg2[%c18] : memref<24xi32, #tpu.memory_space<smem>>
    %c14_i32 = arith.constant 14 : i32
    %c0_i32_82 = arith.constant 0 : i32
    %126 = tpu.memref_slice %arg4[%125, %c0_i32_82] : memref<1024x128xf32, #tpu.memory_space<any>> -> memref<1x128xf32, #tpu.memory_space<any>>
    %c14_i32_83 = arith.constant 14 : i32
    %c0_i32_84 = arith.constant 0 : i32
    %127 = tpu.memref_slice %arg6[%c14_i32_83, %c0_i32_84] : memref<32x128xf32, #tpu.memory_space<vmem>> -> memref<1x128xf32, #tpu.memory_space<vmem>>
    %128 = tpu.memref_slice %arg7[%c14_i32] : memref<32x!tpu.dma_semaphore, #tpu.memory_space<semaphore_mem>> -> memref<1x!tpu.dma_semaphore, #tpu.memory_space<semaphore_mem>>
    %129 = tpu.memref_squeeze %128 : memref<1x!tpu.dma_semaphore, #tpu.memory_space<semaphore_mem>> -> memref<!tpu.dma_semaphore, #tpu.memory_space<semaphore_mem>>
    tpu.enqueue_dma source(%126 : memref<1x128xf32, #tpu.memory_space<any>>) target(%127 : memref<1x128xf32, #tpu.memory_space<vmem>>) target_semaphore(%129 : memref<!tpu.dma_semaphore, #tpu.memory_space<semaphore_mem>>)
    %c19 = arith.constant 19 : index
    %130 = memref.load %arg2[%c19] : memref<24xi32, #tpu.memory_space<smem>>
    %c22_i32 = arith.constant 22 : i32
    %c0_i32_85 = arith.constant 0 : i32
    %131 = tpu.memref_slice %arg4[%130, %c0_i32_85] : memref<1024x128xf32, #tpu.memory_space<any>> -> memref<1x128xf32, #tpu.memory_space<any>>
    %c22_i32_86 = arith.constant 22 : i32
    %c0_i32_87 = arith.constant 0 : i32
    %132 = tpu.memref_slice %arg6[%c22_i32_86, %c0_i32_87] : memref<32x128xf32, #tpu.memory_space<vmem>> -> memref<1x128xf32, #tpu.memory_space<vmem>>
    %133 = tpu.memref_slice %arg7[%c22_i32] : memref<32x!tpu.dma_semaphore, #tpu.memory_space<semaphore_mem>> -> memref<1x!tpu.dma_semaphore, #tpu.memory_space<semaphore_mem>>
    %134 = tpu.memref_squeeze %133 : memref<1x!tpu.dma_semaphore, #tpu.memory_space<semaphore_mem>> -> memref<!tpu.dma_semaphore, #tpu.memory_space<semaphore_mem>>
    tpu.enqueue_dma source(%131 : memref<1x128xf32, #tpu.memory_space<any>>) target(%132 : memref<1x128xf32, #tpu.memory_space<vmem>>) target_semaphore(%134 : memref<!tpu.dma_semaphore, #tpu.memory_space<semaphore_mem>>)
    %c20 = arith.constant 20 : index
    %135 = memref.load %arg2[%c20] : memref<24xi32, #tpu.memory_space<smem>>
    %c30_i32 = arith.constant 30 : i32
    %c0_i32_88 = arith.constant 0 : i32
    %136 = tpu.memref_slice %arg4[%135, %c0_i32_88] : memref<1024x128xf32, #tpu.memory_space<any>> -> memref<1x128xf32, #tpu.memory_space<any>>
    %c30_i32_89 = arith.constant 30 : i32
    %c0_i32_90 = arith.constant 0 : i32
    %137 = tpu.memref_slice %arg6[%c30_i32_89, %c0_i32_90] : memref<32x128xf32, #tpu.memory_space<vmem>> -> memref<1x128xf32, #tpu.memory_space<vmem>>
    %138 = tpu.memref_slice %arg7[%c30_i32] : memref<32x!tpu.dma_semaphore, #tpu.memory_space<semaphore_mem>> -> memref<1x!tpu.dma_semaphore, #tpu.memory_space<semaphore_mem>>
    %139 = tpu.memref_squeeze %138 : memref<1x!tpu.dma_semaphore, #tpu.memory_space<semaphore_mem>> -> memref<!tpu.dma_semaphore, #tpu.memory_space<semaphore_mem>>
    tpu.enqueue_dma source(%136 : memref<1x128xf32, #tpu.memory_space<any>>) target(%137 : memref<1x128xf32, #tpu.memory_space<vmem>>) target_semaphore(%139 : memref<!tpu.dma_semaphore, #tpu.memory_space<semaphore_mem>>)
    %c7_91 = arith.constant 7 : index
    %140 = memref.load %arg1[%c7_91] : memref<8xi32, #tpu.memory_space<smem>>
    %c7_i32 = arith.constant 7 : i32
    %c0_i32_92 = arith.constant 0 : i32
    %141 = tpu.memref_slice %arg3[%140, %c0_i32_92] : memref<16x128xf32, #tpu.memory_space<any>> -> memref<1x128xf32, #tpu.memory_space<any>>
    %c7_i32_93 = arith.constant 7 : i32
    %c0_i32_94 = arith.constant 0 : i32
    %142 = tpu.memref_slice %arg6[%c7_i32_93, %c0_i32_94] : memref<32x128xf32, #tpu.memory_space<vmem>> -> memref<1x128xf32, #tpu.memory_space<vmem>>
    %143 = tpu.memref_slice %arg7[%c7_i32] : memref<32x!tpu.dma_semaphore, #tpu.memory_space<semaphore_mem>> -> memref<1x!tpu.dma_semaphore, #tpu.memory_space<semaphore_mem>>
    %144 = tpu.memref_squeeze %143 : memref<1x!tpu.dma_semaphore, #tpu.memory_space<semaphore_mem>> -> memref<!tpu.dma_semaphore, #tpu.memory_space<semaphore_mem>>
    tpu.enqueue_dma source(%141 : memref<1x128xf32, #tpu.memory_space<any>>) target(%142 : memref<1x128xf32, #tpu.memory_space<vmem>>) target_semaphore(%144 : memref<!tpu.dma_semaphore, #tpu.memory_space<semaphore_mem>>)
    %c21 = arith.constant 21 : index
    %145 = memref.load %arg2[%c21] : memref<24xi32, #tpu.memory_space<smem>>
    %c15_i32 = arith.constant 15 : i32
    %c0_i32_95 = arith.constant 0 : i32
    %146 = tpu.memref_slice %arg4[%145, %c0_i32_95] : memref<1024x128xf32, #tpu.memory_space<any>> -> memref<1x128xf32, #tpu.memory_space<any>>
    %c15_i32_96 = arith.constant 15 : i32
    %c0_i32_97 = arith.constant 0 : i32
    %147 = tpu.memref_slice %arg6[%c15_i32_96, %c0_i32_97] : memref<32x128xf32, #tpu.memory_space<vmem>> -> memref<1x128xf32, #tpu.memory_space<vmem>>
    %148 = tpu.memref_slice %arg7[%c15_i32] : memref<32x!tpu.dma_semaphore, #tpu.memory_space<semaphore_mem>> -> memref<1x!tpu.dma_semaphore, #tpu.memory_space<semaphore_mem>>
    %149 = tpu.memref_squeeze %148 : memref<1x!tpu.dma_semaphore, #tpu.memory_space<semaphore_mem>> -> memref<!tpu.dma_semaphore, #tpu.memory_space<semaphore_mem>>
    tpu.enqueue_dma source(%146 : memref<1x128xf32, #tpu.memory_space<any>>) target(%147 : memref<1x128xf32, #tpu.memory_space<vmem>>) target_semaphore(%149 : memref<!tpu.dma_semaphore, #tpu.memory_space<semaphore_mem>>)
    %c22 = arith.constant 22 : index
    %150 = memref.load %arg2[%c22] : memref<24xi32, #tpu.memory_space<smem>>
    %c23_i32 = arith.constant 23 : i32
    %c0_i32_98 = arith.constant 0 : i32
    %151 = tpu.memref_slice %arg4[%150, %c0_i32_98] : memref<1024x128xf32, #tpu.memory_space<any>> -> memref<1x128xf32, #tpu.memory_space<any>>
    %c23_i32_99 = arith.constant 23 : i32
    %c0_i32_100 = arith.constant 0 : i32
    %152 = tpu.memref_slice %arg6[%c23_i32_99, %c0_i32_100] : memref<32x128xf32, #tpu.memory_space<vmem>> -> memref<1x128xf32, #tpu.memory_space<vmem>>
    %153 = tpu.memref_slice %arg7[%c23_i32] : memref<32x!tpu.dma_semaphore, #tpu.memory_space<semaphore_mem>> -> memref<1x!tpu.dma_semaphore, #tpu.memory_space<semaphore_mem>>
    %154 = tpu.memref_squeeze %153 : memref<1x!tpu.dma_semaphore, #tpu.memory_space<semaphore_mem>> -> memref<!tpu.dma_semaphore, #tpu.memory_space<semaphore_mem>>
    tpu.enqueue_dma source(%151 : memref<1x128xf32, #tpu.memory_space<any>>) target(%152 : memref<1x128xf32, #tpu.memory_space<vmem>>) target_semaphore(%154 : memref<!tpu.dma_semaphore, #tpu.memory_space<semaphore_mem>>)
    %c23 = arith.constant 23 : index
    %155 = memref.load %arg2[%c23] : memref<24xi32, #tpu.memory_space<smem>>
    %c31_i32 = arith.constant 31 : i32
    %c0_i32_101 = arith.constant 0 : i32
    %156 = tpu.memref_slice %arg4[%155, %c0_i32_101] : memref<1024x128xf32, #tpu.memory_space<any>> -> memref<1x128xf32, #tpu.memory_space<any>>
    %c31_i32_102 = arith.constant 31 : i32
    %c0_i32_103 = arith.constant 0 : i32
    %157 = tpu.memref_slice %arg6[%c31_i32_102, %c0_i32_103] : memref<32x128xf32, #tpu.memory_space<vmem>> -> memref<1x128xf32, #tpu.memory_space<vmem>>
    %158 = tpu.memref_slice %arg7[%c31_i32] : memref<32x!tpu.dma_semaphore, #tpu.memory_space<semaphore_mem>> -> memref<1x!tpu.dma_semaphore, #tpu.memory_space<semaphore_mem>>
    %159 = tpu.memref_squeeze %158 : memref<1x!tpu.dma_semaphore, #tpu.memory_space<semaphore_mem>> -> memref<!tpu.dma_semaphore, #tpu.memory_space<semaphore_mem>>
    tpu.enqueue_dma source(%156 : memref<1x128xf32, #tpu.memory_space<any>>) target(%157 : memref<1x128xf32, #tpu.memory_space<vmem>>) target_semaphore(%159 : memref<!tpu.dma_semaphore, #tpu.memory_space<semaphore_mem>>)
    %c0_i32_104 = arith.constant 0 : i32
    %c0_i32_105 = arith.constant 0 : i32
    %160 = tpu.memref_slice %arg3[%0, %c0_i32_105] : memref<16x128xf32, #tpu.memory_space<any>> -> memref<1x128xf32, #tpu.memory_space<any>>
    %c0_i32_106 = arith.constant 0 : i32
    %c0_i32_107 = arith.constant 0 : i32
    %161 = tpu.memref_slice %arg6[%c0_i32_106, %c0_i32_107] : memref<32x128xf32, #tpu.memory_space<vmem>> -> memref<1x128xf32, #tpu.memory_space<vmem>>
    %162 = tpu.memref_slice %arg7[%c0_i32_104] : memref<32x!tpu.dma_semaphore, #tpu.memory_space<semaphore_mem>> -> memref<1x!tpu.dma_semaphore, #tpu.memory_space<semaphore_mem>>
    %163 = tpu.memref_squeeze %162 : memref<1x!tpu.dma_semaphore, #tpu.memory_space<semaphore_mem>> -> memref<!tpu.dma_semaphore, #tpu.memory_space<semaphore_mem>>
    tpu.wait_dma2 semaphore(%163 : memref<!tpu.dma_semaphore, #tpu.memory_space<semaphore_mem>>) src(%160 : memref<1x128xf32, #tpu.memory_space<any>>) dst(%161 : memref<1x128xf32, #tpu.memory_space<vmem>>)
    %c8_i32_108 = arith.constant 8 : i32
    %c0_i32_109 = arith.constant 0 : i32
    %164 = tpu.memref_slice %arg4[%5, %c0_i32_109] : memref<1024x128xf32, #tpu.memory_space<any>> -> memref<1x128xf32, #tpu.memory_space<any>>
    %c8_i32_110 = arith.constant 8 : i32
    %c0_i32_111 = arith.constant 0 : i32
    %165 = tpu.memref_slice %arg6[%c8_i32_110, %c0_i32_111] : memref<32x128xf32, #tpu.memory_space<vmem>> -> memref<1x128xf32, #tpu.memory_space<vmem>>
    %166 = tpu.memref_slice %arg7[%c8_i32_108] : memref<32x!tpu.dma_semaphore, #tpu.memory_space<semaphore_mem>> -> memref<1x!tpu.dma_semaphore, #tpu.memory_space<semaphore_mem>>
    %167 = tpu.memref_squeeze %166 : memref<1x!tpu.dma_semaphore, #tpu.memory_space<semaphore_mem>> -> memref<!tpu.dma_semaphore, #tpu.memory_space<semaphore_mem>>
    tpu.wait_dma2 semaphore(%167 : memref<!tpu.dma_semaphore, #tpu.memory_space<semaphore_mem>>) src(%164 : memref<1x128xf32, #tpu.memory_space<any>>) dst(%165 : memref<1x128xf32, #tpu.memory_space<vmem>>)
    %c16_i32_112 = arith.constant 16 : i32
    %c0_i32_113 = arith.constant 0 : i32
    %168 = tpu.memref_slice %arg4[%10, %c0_i32_113] : memref<1024x128xf32, #tpu.memory_space<any>> -> memref<1x128xf32, #tpu.memory_space<any>>
    %c16_i32_114 = arith.constant 16 : i32
    %c0_i32_115 = arith.constant 0 : i32
    %169 = tpu.memref_slice %arg6[%c16_i32_114, %c0_i32_115] : memref<32x128xf32, #tpu.memory_space<vmem>> -> memref<1x128xf32, #tpu.memory_space<vmem>>
    %170 = tpu.memref_slice %arg7[%c16_i32_112] : memref<32x!tpu.dma_semaphore, #tpu.memory_space<semaphore_mem>> -> memref<1x!tpu.dma_semaphore, #tpu.memory_space<semaphore_mem>>
    %171 = tpu.memref_squeeze %170 : memref<1x!tpu.dma_semaphore, #tpu.memory_space<semaphore_mem>> -> memref<!tpu.dma_semaphore, #tpu.memory_space<semaphore_mem>>
    tpu.wait_dma2 semaphore(%171 : memref<!tpu.dma_semaphore, #tpu.memory_space<semaphore_mem>>) src(%168 : memref<1x128xf32, #tpu.memory_space<any>>) dst(%169 : memref<1x128xf32, #tpu.memory_space<vmem>>)
    %c24_i32_116 = arith.constant 24 : i32
    %c0_i32_117 = arith.constant 0 : i32
    %172 = tpu.memref_slice %arg4[%15, %c0_i32_117] : memref<1024x128xf32, #tpu.memory_space<any>> -> memref<1x128xf32, #tpu.memory_space<any>>
    %c24_i32_118 = arith.constant 24 : i32
    %c0_i32_119 = arith.constant 0 : i32
    %173 = tpu.memref_slice %arg6[%c24_i32_118, %c0_i32_119] : memref<32x128xf32, #tpu.memory_space<vmem>> -> memref<1x128xf32, #tpu.memory_space<vmem>>
    %174 = tpu.memref_slice %arg7[%c24_i32_116] : memref<32x!tpu.dma_semaphore, #tpu.memory_space<semaphore_mem>> -> memref<1x!tpu.dma_semaphore, #tpu.memory_space<semaphore_mem>>
    %175 = tpu.memref_squeeze %174 : memref<1x!tpu.dma_semaphore, #tpu.memory_space<semaphore_mem>> -> memref<!tpu.dma_semaphore, #tpu.memory_space<semaphore_mem>>
    tpu.wait_dma2 semaphore(%175 : memref<!tpu.dma_semaphore, #tpu.memory_space<semaphore_mem>>) src(%172 : memref<1x128xf32, #tpu.memory_space<any>>) dst(%173 : memref<1x128xf32, #tpu.memory_space<vmem>>)
    %c1_i32_120 = arith.constant 1 : i32
    %c0_i32_121 = arith.constant 0 : i32
    %176 = tpu.memref_slice %arg3[%20, %c0_i32_121] : memref<16x128xf32, #tpu.memory_space<any>> -> memref<1x128xf32, #tpu.memory_space<any>>
    %c1_i32_122 = arith.constant 1 : i32
    %c0_i32_123 = arith.constant 0 : i32
    %177 = tpu.memref_slice %arg6[%c1_i32_122, %c0_i32_123] : memref<32x128xf32, #tpu.memory_space<vmem>> -> memref<1x128xf32, #tpu.memory_space<vmem>>
    %178 = tpu.memref_slice %arg7[%c1_i32_120] : memref<32x!tpu.dma_semaphore, #tpu.memory_space<semaphore_mem>> -> memref<1x!tpu.dma_semaphore, #tpu.memory_space<semaphore_mem>>
    %179 = tpu.memref_squeeze %178 : memref<1x!tpu.dma_semaphore, #tpu.memory_space<semaphore_mem>> -> memref<!tpu.dma_semaphore, #tpu.memory_space<semaphore_mem>>
    tpu.wait_dma2 semaphore(%179 : memref<!tpu.dma_semaphore, #tpu.memory_space<semaphore_mem>>) src(%176 : memref<1x128xf32, #tpu.memory_space<any>>) dst(%177 : memref<1x128xf32, #tpu.memory_space<vmem>>)
    %c9_i32_124 = arith.constant 9 : i32
    %c0_i32_125 = arith.constant 0 : i32
    %180 = tpu.memref_slice %arg4[%25, %c0_i32_125] : memref<1024x128xf32, #tpu.memory_space<any>> -> memref<1x128xf32, #tpu.memory_space<any>>
    %c9_i32_126 = arith.constant 9 : i32
    %c0_i32_127 = arith.constant 0 : i32
    %181 = tpu.memref_slice %arg6[%c9_i32_126, %c0_i32_127] : memref<32x128xf32, #tpu.memory_space<vmem>> -> memref<1x128xf32, #tpu.memory_space<vmem>>
    %182 = tpu.memref_slice %arg7[%c9_i32_124] : memref<32x!tpu.dma_semaphore, #tpu.memory_space<semaphore_mem>> -> memref<1x!tpu.dma_semaphore, #tpu.memory_space<semaphore_mem>>
    %183 = tpu.memref_squeeze %182 : memref<1x!tpu.dma_semaphore, #tpu.memory_space<semaphore_mem>> -> memref<!tpu.dma_semaphore, #tpu.memory_space<semaphore_mem>>
    tpu.wait_dma2 semaphore(%183 : memref<!tpu.dma_semaphore, #tpu.memory_space<semaphore_mem>>) src(%180 : memref<1x128xf32, #tpu.memory_space<any>>) dst(%181 : memref<1x128xf32, #tpu.memory_space<vmem>>)
    %c17_i32_128 = arith.constant 17 : i32
    %c0_i32_129 = arith.constant 0 : i32
    %184 = tpu.memref_slice %arg4[%30, %c0_i32_129] : memref<1024x128xf32, #tpu.memory_space<any>> -> memref<1x128xf32, #tpu.memory_space<any>>
    %c17_i32_130 = arith.constant 17 : i32
    %c0_i32_131 = arith.constant 0 : i32
    %185 = tpu.memref_slice %arg6[%c17_i32_130, %c0_i32_131] : memref<32x128xf32, #tpu.memory_space<vmem>> -> memref<1x128xf32, #tpu.memory_space<vmem>>
    %186 = tpu.memref_slice %arg7[%c17_i32_128] : memref<32x!tpu.dma_semaphore, #tpu.memory_space<semaphore_mem>> -> memref<1x!tpu.dma_semaphore, #tpu.memory_space<semaphore_mem>>
    %187 = tpu.memref_squeeze %186 : memref<1x!tpu.dma_semaphore, #tpu.memory_space<semaphore_mem>> -> memref<!tpu.dma_semaphore, #tpu.memory_space<semaphore_mem>>
    tpu.wait_dma2 semaphore(%187 : memref<!tpu.dma_semaphore, #tpu.memory_space<semaphore_mem>>) src(%184 : memref<1x128xf32, #tpu.memory_space<any>>) dst(%185 : memref<1x128xf32, #tpu.memory_space<vmem>>)
    %c25_i32_132 = arith.constant 25 : i32
    %c0_i32_133 = arith.constant 0 : i32
    %188 = tpu.memref_slice %arg4[%35, %c0_i32_133] : memref<1024x128xf32, #tpu.memory_space<any>> -> memref<1x128xf32, #tpu.memory_space<any>>
    %c25_i32_134 = arith.constant 25 : i32
    %c0_i32_135 = arith.constant 0 : i32
    %189 = tpu.memref_slice %arg6[%c25_i32_134, %c0_i32_135] : memref<32x128xf32, #tpu.memory_space<vmem>> -> memref<1x128xf32, #tpu.memory_space<vmem>>
    %190 = tpu.memref_slice %arg7[%c25_i32_132] : memref<32x!tpu.dma_semaphore, #tpu.memory_space<semaphore_mem>> -> memref<1x!tpu.dma_semaphore, #tpu.memory_space<semaphore_mem>>
    %191 = tpu.memref_squeeze %190 : memref<1x!tpu.dma_semaphore, #tpu.memory_space<semaphore_mem>> -> memref<!tpu.dma_semaphore, #tpu.memory_space<semaphore_mem>>
    tpu.wait_dma2 semaphore(%191 : memref<!tpu.dma_semaphore, #tpu.memory_space<semaphore_mem>>) src(%188 : memref<1x128xf32, #tpu.memory_space<any>>) dst(%189 : memref<1x128xf32, #tpu.memory_space<vmem>>)
    %c2_i32_136 = arith.constant 2 : i32
    %c0_i32_137 = arith.constant 0 : i32
    %192 = tpu.memref_slice %arg3[%40, %c0_i32_137] : memref<16x128xf32, #tpu.memory_space<any>> -> memref<1x128xf32, #tpu.memory_space<any>>
    %c2_i32_138 = arith.constant 2 : i32
    %c0_i32_139 = arith.constant 0 : i32
    %193 = tpu.memref_slice %arg6[%c2_i32_138, %c0_i32_139] : memref<32x128xf32, #tpu.memory_space<vmem>> -> memref<1x128xf32, #tpu.memory_space<vmem>>
    %194 = tpu.memref_slice %arg7[%c2_i32_136] : memref<32x!tpu.dma_semaphore, #tpu.memory_space<semaphore_mem>> -> memref<1x!tpu.dma_semaphore, #tpu.memory_space<semaphore_mem>>
    %195 = tpu.memref_squeeze %194 : memref<1x!tpu.dma_semaphore, #tpu.memory_space<semaphore_mem>> -> memref<!tpu.dma_semaphore, #tpu.memory_space<semaphore_mem>>
    tpu.wait_dma2 semaphore(%195 : memref<!tpu.dma_semaphore, #tpu.memory_space<semaphore_mem>>) src(%192 : memref<1x128xf32, #tpu.memory_space<any>>) dst(%193 : memref<1x128xf32, #tpu.memory_space<vmem>>)
    %c10_i32_140 = arith.constant 10 : i32
    %c0_i32_141 = arith.constant 0 : i32
    %196 = tpu.memref_slice %arg4[%45, %c0_i32_141] : memref<1024x128xf32, #tpu.memory_space<any>> -> memref<1x128xf32, #tpu.memory_space<any>>
    %c10_i32_142 = arith.constant 10 : i32
    %c0_i32_143 = arith.constant 0 : i32
    %197 = tpu.memref_slice %arg6[%c10_i32_142, %c0_i32_143] : memref<32x128xf32, #tpu.memory_space<vmem>> -> memref<1x128xf32, #tpu.memory_space<vmem>>
    %198 = tpu.memref_slice %arg7[%c10_i32_140] : memref<32x!tpu.dma_semaphore, #tpu.memory_space<semaphore_mem>> -> memref<1x!tpu.dma_semaphore, #tpu.memory_space<semaphore_mem>>
    %199 = tpu.memref_squeeze %198 : memref<1x!tpu.dma_semaphore, #tpu.memory_space<semaphore_mem>> -> memref<!tpu.dma_semaphore, #tpu.memory_space<semaphore_mem>>
    tpu.wait_dma2 semaphore(%199 : memref<!tpu.dma_semaphore, #tpu.memory_space<semaphore_mem>>) src(%196 : memref<1x128xf32, #tpu.memory_space<any>>) dst(%197 : memref<1x128xf32, #tpu.memory_space<vmem>>)
    %c18_i32_144 = arith.constant 18 : i32
    %c0_i32_145 = arith.constant 0 : i32
    %200 = tpu.memref_slice %arg4[%50, %c0_i32_145] : memref<1024x128xf32, #tpu.memory_space<any>> -> memref<1x128xf32, #tpu.memory_space<any>>
    %c18_i32_146 = arith.constant 18 : i32
    %c0_i32_147 = arith.constant 0 : i32
    %201 = tpu.memref_slice %arg6[%c18_i32_146, %c0_i32_147] : memref<32x128xf32, #tpu.memory_space<vmem>> -> memref<1x128xf32, #tpu.memory_space<vmem>>
    %202 = tpu.memref_slice %arg7[%c18_i32_144] : memref<32x!tpu.dma_semaphore, #tpu.memory_space<semaphore_mem>> -> memref<1x!tpu.dma_semaphore, #tpu.memory_space<semaphore_mem>>
    %203 = tpu.memref_squeeze %202 : memref<1x!tpu.dma_semaphore, #tpu.memory_space<semaphore_mem>> -> memref<!tpu.dma_semaphore, #tpu.memory_space<semaphore_mem>>
    tpu.wait_dma2 semaphore(%203 : memref<!tpu.dma_semaphore, #tpu.memory_space<semaphore_mem>>) src(%200 : memref<1x128xf32, #tpu.memory_space<any>>) dst(%201 : memref<1x128xf32, #tpu.memory_space<vmem>>)
    %c26_i32_148 = arith.constant 26 : i32
    %c0_i32_149 = arith.constant 0 : i32
    %204 = tpu.memref_slice %arg4[%55, %c0_i32_149] : memref<1024x128xf32, #tpu.memory_space<any>> -> memref<1x128xf32, #tpu.memory_space<any>>
    %c26_i32_150 = arith.constant 26 : i32
    %c0_i32_151 = arith.constant 0 : i32
    %205 = tpu.memref_slice %arg6[%c26_i32_150, %c0_i32_151] : memref<32x128xf32, #tpu.memory_space<vmem>> -> memref<1x128xf32, #tpu.memory_space<vmem>>
    %206 = tpu.memref_slice %arg7[%c26_i32_148] : memref<32x!tpu.dma_semaphore, #tpu.memory_space<semaphore_mem>> -> memref<1x!tpu.dma_semaphore, #tpu.memory_space<semaphore_mem>>
    %207 = tpu.memref_squeeze %206 : memref<1x!tpu.dma_semaphore, #tpu.memory_space<semaphore_mem>> -> memref<!tpu.dma_semaphore, #tpu.memory_space<semaphore_mem>>
    tpu.wait_dma2 semaphore(%207 : memref<!tpu.dma_semaphore, #tpu.memory_space<semaphore_mem>>) src(%204 : memref<1x128xf32, #tpu.memory_space<any>>) dst(%205 : memref<1x128xf32, #tpu.memory_space<vmem>>)
    %c3_i32_152 = arith.constant 3 : i32
    %c0_i32_153 = arith.constant 0 : i32
    %208 = tpu.memref_slice %arg3[%60, %c0_i32_153] : memref<16x128xf32, #tpu.memory_space<any>> -> memref<1x128xf32, #tpu.memory_space<any>>
    %c3_i32_154 = arith.constant 3 : i32
    %c0_i32_155 = arith.constant 0 : i32
    %209 = tpu.memref_slice %arg6[%c3_i32_154, %c0_i32_155] : memref<32x128xf32, #tpu.memory_space<vmem>> -> memref<1x128xf32, #tpu.memory_space<vmem>>
    %210 = tpu.memref_slice %arg7[%c3_i32_152] : memref<32x!tpu.dma_semaphore, #tpu.memory_space<semaphore_mem>> -> memref<1x!tpu.dma_semaphore, #tpu.memory_space<semaphore_mem>>
    %211 = tpu.memref_squeeze %210 : memref<1x!tpu.dma_semaphore, #tpu.memory_space<semaphore_mem>> -> memref<!tpu.dma_semaphore, #tpu.memory_space<semaphore_mem>>
    tpu.wait_dma2 semaphore(%211 : memref<!tpu.dma_semaphore, #tpu.memory_space<semaphore_mem>>) src(%208 : memref<1x128xf32, #tpu.memory_space<any>>) dst(%209 : memref<1x128xf32, #tpu.memory_space<vmem>>)
    %c11_i32_156 = arith.constant 11 : i32
    %c0_i32_157 = arith.constant 0 : i32
    %212 = tpu.memref_slice %arg4[%65, %c0_i32_157] : memref<1024x128xf32, #tpu.memory_space<any>> -> memref<1x128xf32, #tpu.memory_space<any>>
    %c11_i32_158 = arith.constant 11 : i32
    %c0_i32_159 = arith.constant 0 : i32
    %213 = tpu.memref_slice %arg6[%c11_i32_158, %c0_i32_159] : memref<32x128xf32, #tpu.memory_space<vmem>> -> memref<1x128xf32, #tpu.memory_space<vmem>>
    %214 = tpu.memref_slice %arg7[%c11_i32_156] : memref<32x!tpu.dma_semaphore, #tpu.memory_space<semaphore_mem>> -> memref<1x!tpu.dma_semaphore, #tpu.memory_space<semaphore_mem>>
    %215 = tpu.memref_squeeze %214 : memref<1x!tpu.dma_semaphore, #tpu.memory_space<semaphore_mem>> -> memref<!tpu.dma_semaphore, #tpu.memory_space<semaphore_mem>>
    tpu.wait_dma2 semaphore(%215 : memref<!tpu.dma_semaphore, #tpu.memory_space<semaphore_mem>>) src(%212 : memref<1x128xf32, #tpu.memory_space<any>>) dst(%213 : memref<1x128xf32, #tpu.memory_space<vmem>>)
    %c19_i32_160 = arith.constant 19 : i32
    %c0_i32_161 = arith.constant 0 : i32
    %216 = tpu.memref_slice %arg4[%70, %c0_i32_161] : memref<1024x128xf32, #tpu.memory_space<any>> -> memref<1x128xf32, #tpu.memory_space<any>>
    %c19_i32_162 = arith.constant 19 : i32
    %c0_i32_163 = arith.constant 0 : i32
    %217 = tpu.memref_slice %arg6[%c19_i32_162, %c0_i32_163] : memref<32x128xf32, #tpu.memory_space<vmem>> -> memref<1x128xf32, #tpu.memory_space<vmem>>
    %218 = tpu.memref_slice %arg7[%c19_i32_160] : memref<32x!tpu.dma_semaphore, #tpu.memory_space<semaphore_mem>> -> memref<1x!tpu.dma_semaphore, #tpu.memory_space<semaphore_mem>>
    %219 = tpu.memref_squeeze %218 : memref<1x!tpu.dma_semaphore, #tpu.memory_space<semaphore_mem>> -> memref<!tpu.dma_semaphore, #tpu.memory_space<semaphore_mem>>
    tpu.wait_dma2 semaphore(%219 : memref<!tpu.dma_semaphore, #tpu.memory_space<semaphore_mem>>) src(%216 : memref<1x128xf32, #tpu.memory_space<any>>) dst(%217 : memref<1x128xf32, #tpu.memory_space<vmem>>)
    %c27_i32_164 = arith.constant 27 : i32
    %c0_i32_165 = arith.constant 0 : i32
    %220 = tpu.memref_slice %arg4[%75, %c0_i32_165] : memref<1024x128xf32, #tpu.memory_space<any>> -> memref<1x128xf32, #tpu.memory_space<any>>
    %c27_i32_166 = arith.constant 27 : i32
    %c0_i32_167 = arith.constant 0 : i32
    %221 = tpu.memref_slice %arg6[%c27_i32_166, %c0_i32_167] : memref<32x128xf32, #tpu.memory_space<vmem>> -> memref<1x128xf32, #tpu.memory_space<vmem>>
    %222 = tpu.memref_slice %arg7[%c27_i32_164] : memref<32x!tpu.dma_semaphore, #tpu.memory_space<semaphore_mem>> -> memref<1x!tpu.dma_semaphore, #tpu.memory_space<semaphore_mem>>
    %223 = tpu.memref_squeeze %222 : memref<1x!tpu.dma_semaphore, #tpu.memory_space<semaphore_mem>> -> memref<!tpu.dma_semaphore, #tpu.memory_space<semaphore_mem>>
    tpu.wait_dma2 semaphore(%223 : memref<!tpu.dma_semaphore, #tpu.memory_space<semaphore_mem>>) src(%220 : memref<1x128xf32, #tpu.memory_space<any>>) dst(%221 : memref<1x128xf32, #tpu.memory_space<vmem>>)
    %c4_i32_168 = arith.constant 4 : i32
    %c0_i32_169 = arith.constant 0 : i32
    %224 = tpu.memref_slice %arg3[%80, %c0_i32_169] : memref<16x128xf32, #tpu.memory_space<any>> -> memref<1x128xf32, #tpu.memory_space<any>>
    %c4_i32_170 = arith.constant 4 : i32
    %c0_i32_171 = arith.constant 0 : i32
    %225 = tpu.memref_slice %arg6[%c4_i32_170, %c0_i32_171] : memref<32x128xf32, #tpu.memory_space<vmem>> -> memref<1x128xf32, #tpu.memory_space<vmem>>
    %226 = tpu.memref_slice %arg7[%c4_i32_168] : memref<32x!tpu.dma_semaphore, #tpu.memory_space<semaphore_mem>> -> memref<1x!tpu.dma_semaphore, #tpu.memory_space<semaphore_mem>>
    %227 = tpu.memref_squeeze %226 : memref<1x!tpu.dma_semaphore, #tpu.memory_space<semaphore_mem>> -> memref<!tpu.dma_semaphore, #tpu.memory_space<semaphore_mem>>
    tpu.wait_dma2 semaphore(%227 : memref<!tpu.dma_semaphore, #tpu.memory_space<semaphore_mem>>) src(%224 : memref<1x128xf32, #tpu.memory_space<any>>) dst(%225 : memref<1x128xf32, #tpu.memory_space<vmem>>)
    %c12_i32_172 = arith.constant 12 : i32
    %c0_i32_173 = arith.constant 0 : i32
    %228 = tpu.memref_slice %arg4[%85, %c0_i32_173] : memref<1024x128xf32, #tpu.memory_space<any>> -> memref<1x128xf32, #tpu.memory_space<any>>
    %c12_i32_174 = arith.constant 12 : i32
    %c0_i32_175 = arith.constant 0 : i32
    %229 = tpu.memref_slice %arg6[%c12_i32_174, %c0_i32_175] : memref<32x128xf32, #tpu.memory_space<vmem>> -> memref<1x128xf32, #tpu.memory_space<vmem>>
    %230 = tpu.memref_slice %arg7[%c12_i32_172] : memref<32x!tpu.dma_semaphore, #tpu.memory_space<semaphore_mem>> -> memref<1x!tpu.dma_semaphore, #tpu.memory_space<semaphore_mem>>
    %231 = tpu.memref_squeeze %230 : memref<1x!tpu.dma_semaphore, #tpu.memory_space<semaphore_mem>> -> memref<!tpu.dma_semaphore, #tpu.memory_space<semaphore_mem>>
    tpu.wait_dma2 semaphore(%231 : memref<!tpu.dma_semaphore, #tpu.memory_space<semaphore_mem>>) src(%228 : memref<1x128xf32, #tpu.memory_space<any>>) dst(%229 : memref<1x128xf32, #tpu.memory_space<vmem>>)
    %c20_i32_176 = arith.constant 20 : i32
    %c0_i32_177 = arith.constant 0 : i32
    %232 = tpu.memref_slice %arg4[%90, %c0_i32_177] : memref<1024x128xf32, #tpu.memory_space<any>> -> memref<1x128xf32, #tpu.memory_space<any>>
    %c20_i32_178 = arith.constant 20 : i32
    %c0_i32_179 = arith.constant 0 : i32
    %233 = tpu.memref_slice %arg6[%c20_i32_178, %c0_i32_179] : memref<32x128xf32, #tpu.memory_space<vmem>> -> memref<1x128xf32, #tpu.memory_space<vmem>>
    %234 = tpu.memref_slice %arg7[%c20_i32_176] : memref<32x!tpu.dma_semaphore, #tpu.memory_space<semaphore_mem>> -> memref<1x!tpu.dma_semaphore, #tpu.memory_space<semaphore_mem>>
    %235 = tpu.memref_squeeze %234 : memref<1x!tpu.dma_semaphore, #tpu.memory_space<semaphore_mem>> -> memref<!tpu.dma_semaphore, #tpu.memory_space<semaphore_mem>>
    tpu.wait_dma2 semaphore(%235 : memref<!tpu.dma_semaphore, #tpu.memory_space<semaphore_mem>>) src(%232 : memref<1x128xf32, #tpu.memory_space<any>>) dst(%233 : memref<1x128xf32, #tpu.memory_space<vmem>>)
    %c28_i32_180 = arith.constant 28 : i32
    %c0_i32_181 = arith.constant 0 : i32
    %236 = tpu.memref_slice %arg4[%95, %c0_i32_181] : memref<1024x128xf32, #tpu.memory_space<any>> -> memref<1x128xf32, #tpu.memory_space<any>>
    %c28_i32_182 = arith.constant 28 : i32
    %c0_i32_183 = arith.constant 0 : i32
    %237 = tpu.memref_slice %arg6[%c28_i32_182, %c0_i32_183] : memref<32x128xf32, #tpu.memory_space<vmem>> -> memref<1x128xf32, #tpu.memory_space<vmem>>
    %238 = tpu.memref_slice %arg7[%c28_i32_180] : memref<32x!tpu.dma_semaphore, #tpu.memory_space<semaphore_mem>> -> memref<1x!tpu.dma_semaphore, #tpu.memory_space<semaphore_mem>>
    %239 = tpu.memref_squeeze %238 : memref<1x!tpu.dma_semaphore, #tpu.memory_space<semaphore_mem>> -> memref<!tpu.dma_semaphore, #tpu.memory_space<semaphore_mem>>
    tpu.wait_dma2 semaphore(%239 : memref<!tpu.dma_semaphore, #tpu.memory_space<semaphore_mem>>) src(%236 : memref<1x128xf32, #tpu.memory_space<any>>) dst(%237 : memref<1x128xf32, #tpu.memory_space<vmem>>)
    %c5_i32_184 = arith.constant 5 : i32
    %c0_i32_185 = arith.constant 0 : i32
    %240 = tpu.memref_slice %arg3[%100, %c0_i32_185] : memref<16x128xf32, #tpu.memory_space<any>> -> memref<1x128xf32, #tpu.memory_space<any>>
    %c5_i32_186 = arith.constant 5 : i32
    %c0_i32_187 = arith.constant 0 : i32
    %241 = tpu.memref_slice %arg6[%c5_i32_186, %c0_i32_187] : memref<32x128xf32, #tpu.memory_space<vmem>> -> memref<1x128xf32, #tpu.memory_space<vmem>>
    %242 = tpu.memref_slice %arg7[%c5_i32_184] : memref<32x!tpu.dma_semaphore, #tpu.memory_space<semaphore_mem>> -> memref<1x!tpu.dma_semaphore, #tpu.memory_space<semaphore_mem>>
    %243 = tpu.memref_squeeze %242 : memref<1x!tpu.dma_semaphore, #tpu.memory_space<semaphore_mem>> -> memref<!tpu.dma_semaphore, #tpu.memory_space<semaphore_mem>>
    tpu.wait_dma2 semaphore(%243 : memref<!tpu.dma_semaphore, #tpu.memory_space<semaphore_mem>>) src(%240 : memref<1x128xf32, #tpu.memory_space<any>>) dst(%241 : memref<1x128xf32, #tpu.memory_space<vmem>>)
    %c13_i32_188 = arith.constant 13 : i32
    %c0_i32_189 = arith.constant 0 : i32
    %244 = tpu.memref_slice %arg4[%105, %c0_i32_189] : memref<1024x128xf32, #tpu.memory_space<any>> -> memref<1x128xf32, #tpu.memory_space<any>>
    %c13_i32_190 = arith.constant 13 : i32
    %c0_i32_191 = arith.constant 0 : i32
    %245 = tpu.memref_slice %arg6[%c13_i32_190, %c0_i32_191] : memref<32x128xf32, #tpu.memory_space<vmem>> -> memref<1x128xf32, #tpu.memory_space<vmem>>
    %246 = tpu.memref_slice %arg7[%c13_i32_188] : memref<32x!tpu.dma_semaphore, #tpu.memory_space<semaphore_mem>> -> memref<1x!tpu.dma_semaphore, #tpu.memory_space<semaphore_mem>>
    %247 = tpu.memref_squeeze %246 : memref<1x!tpu.dma_semaphore, #tpu.memory_space<semaphore_mem>> -> memref<!tpu.dma_semaphore, #tpu.memory_space<semaphore_mem>>
    tpu.wait_dma2 semaphore(%247 : memref<!tpu.dma_semaphore, #tpu.memory_space<semaphore_mem>>) src(%244 : memref<1x128xf32, #tpu.memory_space<any>>) dst(%245 : memref<1x128xf32, #tpu.memory_space<vmem>>)
    %c21_i32_192 = arith.constant 21 : i32
    %c0_i32_193 = arith.constant 0 : i32
    %248 = tpu.memref_slice %arg4[%110, %c0_i32_193] : memref<1024x128xf32, #tpu.memory_space<any>> -> memref<1x128xf32, #tpu.memory_space<any>>
    %c21_i32_194 = arith.constant 21 : i32
    %c0_i32_195 = arith.constant 0 : i32
    %249 = tpu.memref_slice %arg6[%c21_i32_194, %c0_i32_195] : memref<32x128xf32, #tpu.memory_space<vmem>> -> memref<1x128xf32, #tpu.memory_space<vmem>>
    %250 = tpu.memref_slice %arg7[%c21_i32_192] : memref<32x!tpu.dma_semaphore, #tpu.memory_space<semaphore_mem>> -> memref<1x!tpu.dma_semaphore, #tpu.memory_space<semaphore_mem>>
    %251 = tpu.memref_squeeze %250 : memref<1x!tpu.dma_semaphore, #tpu.memory_space<semaphore_mem>> -> memref<!tpu.dma_semaphore, #tpu.memory_space<semaphore_mem>>
    tpu.wait_dma2 semaphore(%251 : memref<!tpu.dma_semaphore, #tpu.memory_space<semaphore_mem>>) src(%248 : memref<1x128xf32, #tpu.memory_space<any>>) dst(%249 : memref<1x128xf32, #tpu.memory_space<vmem>>)
    %c29_i32_196 = arith.constant 29 : i32
    %c0_i32_197 = arith.constant 0 : i32
    %252 = tpu.memref_slice %arg4[%115, %c0_i32_197] : memref<1024x128xf32, #tpu.memory_space<any>> -> memref<1x128xf32, #tpu.memory_space<any>>
    %c29_i32_198 = arith.constant 29 : i32
    %c0_i32_199 = arith.constant 0 : i32
    %253 = tpu.memref_slice %arg6[%c29_i32_198, %c0_i32_199] : memref<32x128xf32, #tpu.memory_space<vmem>> -> memref<1x128xf32, #tpu.memory_space<vmem>>
    %254 = tpu.memref_slice %arg7[%c29_i32_196] : memref<32x!tpu.dma_semaphore, #tpu.memory_space<semaphore_mem>> -> memref<1x!tpu.dma_semaphore, #tpu.memory_space<semaphore_mem>>
    %255 = tpu.memref_squeeze %254 : memref<1x!tpu.dma_semaphore, #tpu.memory_space<semaphore_mem>> -> memref<!tpu.dma_semaphore, #tpu.memory_space<semaphore_mem>>
    tpu.wait_dma2 semaphore(%255 : memref<!tpu.dma_semaphore, #tpu.memory_space<semaphore_mem>>) src(%252 : memref<1x128xf32, #tpu.memory_space<any>>) dst(%253 : memref<1x128xf32, #tpu.memory_space<vmem>>)
    %c6_i32_200 = arith.constant 6 : i32
    %c0_i32_201 = arith.constant 0 : i32
    %256 = tpu.memref_slice %arg3[%120, %c0_i32_201] : memref<16x128xf32, #tpu.memory_space<any>> -> memref<1x128xf32, #tpu.memory_space<any>>
    %c6_i32_202 = arith.constant 6 : i32
    %c0_i32_203 = arith.constant 0 : i32
    %257 = tpu.memref_slice %arg6[%c6_i32_202, %c0_i32_203] : memref<32x128xf32, #tpu.memory_space<vmem>> -> memref<1x128xf32, #tpu.memory_space<vmem>>
    %258 = tpu.memref_slice %arg7[%c6_i32_200] : memref<32x!tpu.dma_semaphore, #tpu.memory_space<semaphore_mem>> -> memref<1x!tpu.dma_semaphore, #tpu.memory_space<semaphore_mem>>
    %259 = tpu.memref_squeeze %258 : memref<1x!tpu.dma_semaphore, #tpu.memory_space<semaphore_mem>> -> memref<!tpu.dma_semaphore, #tpu.memory_space<semaphore_mem>>
    tpu.wait_dma2 semaphore(%259 : memref<!tpu.dma_semaphore, #tpu.memory_space<semaphore_mem>>) src(%256 : memref<1x128xf32, #tpu.memory_space<any>>) dst(%257 : memref<1x128xf32, #tpu.memory_space<vmem>>)
    %c14_i32_204 = arith.constant 14 : i32
    %c0_i32_205 = arith.constant 0 : i32
    %260 = tpu.memref_slice %arg4[%125, %c0_i32_205] : memref<1024x128xf32, #tpu.memory_space<any>> -> memref<1x128xf32, #tpu.memory_space<any>>
    %c14_i32_206 = arith.constant 14 : i32
    %c0_i32_207 = arith.constant 0 : i32
    %261 = tpu.memref_slice %arg6[%c14_i32_206, %c0_i32_207] : memref<32x128xf32, #tpu.memory_space<vmem>> -> memref<1x128xf32, #tpu.memory_space<vmem>>
    %262 = tpu.memref_slice %arg7[%c14_i32_204] : memref<32x!tpu.dma_semaphore, #tpu.memory_space<semaphore_mem>> -> memref<1x!tpu.dma_semaphore, #tpu.memory_space<semaphore_mem>>
    %263 = tpu.memref_squeeze %262 : memref<1x!tpu.dma_semaphore, #tpu.memory_space<semaphore_mem>> -> memref<!tpu.dma_semaphore, #tpu.memory_space<semaphore_mem>>
    tpu.wait_dma2 semaphore(%263 : memref<!tpu.dma_semaphore, #tpu.memory_space<semaphore_mem>>) src(%260 : memref<1x128xf32, #tpu.memory_space<any>>) dst(%261 : memref<1x128xf32, #tpu.memory_space<vmem>>)
    %c22_i32_208 = arith.constant 22 : i32
    %c0_i32_209 = arith.constant 0 : i32
    %264 = tpu.memref_slice %arg4[%130, %c0_i32_209] : memref<1024x128xf32, #tpu.memory_space<any>> -> memref<1x128xf32, #tpu.memory_space<any>>
    %c22_i32_210 = arith.constant 22 : i32
    %c0_i32_211 = arith.constant 0 : i32
    %265 = tpu.memref_slice %arg6[%c22_i32_210, %c0_i32_211] : memref<32x128xf32, #tpu.memory_space<vmem>> -> memref<1x128xf32, #tpu.memory_space<vmem>>
    %266 = tpu.memref_slice %arg7[%c22_i32_208] : memref<32x!tpu.dma_semaphore, #tpu.memory_space<semaphore_mem>> -> memref<1x!tpu.dma_semaphore, #tpu.memory_space<semaphore_mem>>
    %267 = tpu.memref_squeeze %266 : memref<1x!tpu.dma_semaphore, #tpu.memory_space<semaphore_mem>> -> memref<!tpu.dma_semaphore, #tpu.memory_space<semaphore_mem>>
    tpu.wait_dma2 semaphore(%267 : memref<!tpu.dma_semaphore, #tpu.memory_space<semaphore_mem>>) src(%264 : memref<1x128xf32, #tpu.memory_space<any>>) dst(%265 : memref<1x128xf32, #tpu.memory_space<vmem>>)
    %c30_i32_212 = arith.constant 30 : i32
    %c0_i32_213 = arith.constant 0 : i32
    %268 = tpu.memref_slice %arg4[%135, %c0_i32_213] : memref<1024x128xf32, #tpu.memory_space<any>> -> memref<1x128xf32, #tpu.memory_space<any>>
    %c30_i32_214 = arith.constant 30 : i32
    %c0_i32_215 = arith.constant 0 : i32
    %269 = tpu.memref_slice %arg6[%c30_i32_214, %c0_i32_215] : memref<32x128xf32, #tpu.memory_space<vmem>> -> memref<1x128xf32, #tpu.memory_space<vmem>>
    %270 = tpu.memref_slice %arg7[%c30_i32_212] : memref<32x!tpu.dma_semaphore, #tpu.memory_space<semaphore_mem>> -> memref<1x!tpu.dma_semaphore, #tpu.memory_space<semaphore_mem>>
    %271 = tpu.memref_squeeze %270 : memref<1x!tpu.dma_semaphore, #tpu.memory_space<semaphore_mem>> -> memref<!tpu.dma_semaphore, #tpu.memory_space<semaphore_mem>>
    tpu.wait_dma2 semaphore(%271 : memref<!tpu.dma_semaphore, #tpu.memory_space<semaphore_mem>>) src(%268 : memref<1x128xf32, #tpu.memory_space<any>>) dst(%269 : memref<1x128xf32, #tpu.memory_space<vmem>>)
    %c7_i32_216 = arith.constant 7 : i32
    %c0_i32_217 = arith.constant 0 : i32
    %272 = tpu.memref_slice %arg3[%140, %c0_i32_217] : memref<16x128xf32, #tpu.memory_space<any>> -> memref<1x128xf32, #tpu.memory_space<any>>
    %c7_i32_218 = arith.constant 7 : i32
    %c0_i32_219 = arith.constant 0 : i32
    %273 = tpu.memref_slice %arg6[%c7_i32_218, %c0_i32_219] : memref<32x128xf32, #tpu.memory_space<vmem>> -> memref<1x128xf32, #tpu.memory_space<vmem>>
    %274 = tpu.memref_slice %arg7[%c7_i32_216] : memref<32x!tpu.dma_semaphore, #tpu.memory_space<semaphore_mem>> -> memref<1x!tpu.dma_semaphore, #tpu.memory_space<semaphore_mem>>
    %275 = tpu.memref_squeeze %274 : memref<1x!tpu.dma_semaphore, #tpu.memory_space<semaphore_mem>> -> memref<!tpu.dma_semaphore, #tpu.memory_space<semaphore_mem>>
    tpu.wait_dma2 semaphore(%275 : memref<!tpu.dma_semaphore, #tpu.memory_space<semaphore_mem>>) src(%272 : memref<1x128xf32, #tpu.memory_space<any>>) dst(%273 : memref<1x128xf32, #tpu.memory_space<vmem>>)
    %c15_i32_220 = arith.constant 15 : i32
    %c0_i32_221 = arith.constant 0 : i32
    %276 = tpu.memref_slice %arg4[%145, %c0_i32_221] : memref<1024x128xf32, #tpu.memory_space<any>> -> memref<1x128xf32, #tpu.memory_space<any>>
    %c15_i32_222 = arith.constant 15 : i32
    %c0_i32_223 = arith.constant 0 : i32
    %277 = tpu.memref_slice %arg6[%c15_i32_222, %c0_i32_223] : memref<32x128xf32, #tpu.memory_space<vmem>> -> memref<1x128xf32, #tpu.memory_space<vmem>>
    %278 = tpu.memref_slice %arg7[%c15_i32_220] : memref<32x!tpu.dma_semaphore, #tpu.memory_space<semaphore_mem>> -> memref<1x!tpu.dma_semaphore, #tpu.memory_space<semaphore_mem>>
    %279 = tpu.memref_squeeze %278 : memref<1x!tpu.dma_semaphore, #tpu.memory_space<semaphore_mem>> -> memref<!tpu.dma_semaphore, #tpu.memory_space<semaphore_mem>>
    tpu.wait_dma2 semaphore(%279 : memref<!tpu.dma_semaphore, #tpu.memory_space<semaphore_mem>>) src(%276 : memref<1x128xf32, #tpu.memory_space<any>>) dst(%277 : memref<1x128xf32, #tpu.memory_space<vmem>>)
    %c23_i32_224 = arith.constant 23 : i32
    %c0_i32_225 = arith.constant 0 : i32
    %280 = tpu.memref_slice %arg4[%150, %c0_i32_225] : memref<1024x128xf32, #tpu.memory_space<any>> -> memref<1x128xf32, #tpu.memory_space<any>>
    %c23_i32_226 = arith.constant 23 : i32
    %c0_i32_227 = arith.constant 0 : i32
    %281 = tpu.memref_slice %arg6[%c23_i32_226, %c0_i32_227] : memref<32x128xf32, #tpu.memory_space<vmem>> -> memref<1x128xf32, #tpu.memory_space<vmem>>
    %282 = tpu.memref_slice %arg7[%c23_i32_224] : memref<32x!tpu.dma_semaphore, #tpu.memory_space<semaphore_mem>> -> memref<1x!tpu.dma_semaphore, #tpu.memory_space<semaphore_mem>>
    %283 = tpu.memref_squeeze %282 : memref<1x!tpu.dma_semaphore, #tpu.memory_space<semaphore_mem>> -> memref<!tpu.dma_semaphore, #tpu.memory_space<semaphore_mem>>
    tpu.wait_dma2 semaphore(%283 : memref<!tpu.dma_semaphore, #tpu.memory_space<semaphore_mem>>) src(%280 : memref<1x128xf32, #tpu.memory_space<any>>) dst(%281 : memref<1x128xf32, #tpu.memory_space<vmem>>)
    %c31_i32_228 = arith.constant 31 : i32
    %c0_i32_229 = arith.constant 0 : i32
    %284 = tpu.memref_slice %arg4[%155, %c0_i32_229] : memref<1024x128xf32, #tpu.memory_space<any>> -> memref<1x128xf32, #tpu.memory_space<any>>
    %c31_i32_230 = arith.constant 31 : i32
    %c0_i32_231 = arith.constant 0 : i32
    %285 = tpu.memref_slice %arg6[%c31_i32_230, %c0_i32_231] : memref<32x128xf32, #tpu.memory_space<vmem>> -> memref<1x128xf32, #tpu.memory_space<vmem>>
    %286 = tpu.memref_slice %arg7[%c31_i32_228] : memref<32x!tpu.dma_semaphore, #tpu.memory_space<semaphore_mem>> -> memref<1x!tpu.dma_semaphore, #tpu.memory_space<semaphore_mem>>
    %287 = tpu.memref_squeeze %286 : memref<1x!tpu.dma_semaphore, #tpu.memory_space<semaphore_mem>> -> memref<!tpu.dma_semaphore, #tpu.memory_space<semaphore_mem>>
    tpu.wait_dma2 semaphore(%287 : memref<!tpu.dma_semaphore, #tpu.memory_space<semaphore_mem>>) src(%284 : memref<1x128xf32, #tpu.memory_space<any>>) dst(%285 : memref<1x128xf32, #tpu.memory_space<vmem>>)
    %c0_232 = arith.constant 0 : index
    %c0_233 = arith.constant 0 : index
    %288 = vector.load %arg6[%c0_232, %c0_233] : memref<32x128xf32, #tpu.memory_space<vmem>>, vector<8x128xf32>
    %c8_234 = arith.constant 8 : index
    %c0_235 = arith.constant 0 : index
    %289 = vector.load %arg6[%c8_234, %c0_235] : memref<32x128xf32, #tpu.memory_space<vmem>>, vector<8x128xf32>
    %290 = arith.addf %288, %289 : vector<8x128xf32>
    %c16_236 = arith.constant 16 : index
    %c0_237 = arith.constant 0 : index
    %291 = vector.load %arg6[%c16_236, %c0_237] : memref<32x128xf32, #tpu.memory_space<vmem>>, vector<8x128xf32>
    %292 = arith.addf %290, %291 : vector<8x128xf32>
    %c24 = arith.constant 24 : index
    %c0_238 = arith.constant 0 : index
    %293 = vector.load %arg6[%c24, %c0_238] : memref<32x128xf32, #tpu.memory_space<vmem>>, vector<8x128xf32>
    %294 = arith.addf %292, %293 : vector<8x128xf32>
    %295 = arith.truncf %294 : vector<8x128xf32> to vector<8x128xbf16>
    %c0_239 = arith.constant 0 : index
    %c0_240 = arith.constant 0 : index
    %296 = vector.load %arg5[%c0_239, %c0_240] : memref<8x128xbf16, #tpu.memory_space<vmem>>, vector<8x128xbf16>
    tpu.vector_store %arg5[%c0_239, %c0_240], %295 {strides = array<i32>} : memref<8x128xbf16, #tpu.memory_space<vmem>>, vector<8x128xbf16>,
    return
  }
  func.func @transform_2(%arg0: i32, %arg1: memref<8xi32, #tpu.memory_space<smem>>, %arg2: memref<24xi32, #tpu.memory_space<smem>>) -> (i32, i32) {
    %c0_i32 = arith.constant 0 : i32
    %c0_i32_0 = arith.constant 0 : i32
    %c0_i32_1 = arith.constant 0 : i32
    return %c0_i32, %c0_i32_0 : i32, i32
  }
}

</mosaic_0001>

<llo_original>
// kernel: tpu_custom_call.1
$region0: #{tpu_custom_call.1}
  #allocation0 [shape = 'u32[]', space=smem, size = 0x4, offset = 0x4, fixed_abs, tag = 'smem constant byte address 0x4 - core index']
  #allocation1 [shape = 'u32[144,128]{1,0:T(1,128)}', space=vmem, size = 0x12000, scoped, tag = 'internal scratch']
  #allocation2 [shape = 'f32[32,128]{1,0:T(8,128)}', space=vmem, size = 0x4000, scoped, tag = 'scratch operand']
  #allocation3 [shape = 's32[32]{0}', space=sflag, size = 0x80, scoped, tag = 'scratch operand']
  #allocation4 [shape = 's32[1]{0}', space=sflag, size = 0x4, scoped, tag = 'scoped memory for tpu_custom_call.1']
  #allocation5 [shape = 'u8[512]{0}', space=smem, size = 0x200, scoped, tag = 'prefetched SMEM operand 0']
  #allocation6 [shape = 'u8[512]{0}', space=smem, size = 0x200, scoped, tag = 'prefetched SMEM operand 1']
  #allocation9 [shape = 's32[]', space=sflag, size = 0x4, offset = 0, fixed_abs, tag = 'sflag constant byte address 0x0 - dummy sync flag']
  #allocation10 [shape = 's32[]', space=sflag, size = 0x4, offset = 0, fixed_abs, tag = 'sflag constant byte address 0x0 - dummy sync flag']
  #allocation11 [shape = 'u32[]', space=smem, size = 0x4, offset = 0x44, fixed_abs, tag = 'smem constant byte address 0x44 - assertion arg 0']
  #allocation12 [shape = 'u32[]', space=smem, size = 0x4, offset = 0x48, fixed_abs, tag = 'smem constant byte address 0x48 - assertion arg 1']
  #allocation13 [shape = 's32[]', space=sflag, size = 0x4, offset = 0, fixed_abs, tag = 'sflag constant byte address 0x0 - dummy sync flag']
  #allocation14 [shape = 's32[]', space=sflag, size = 0x4, offset = 0, fixed_abs, tag = 'sflag constant byte address 0x0 - dummy sync flag']
  #allocation15 [shape = 's32[]', space=sflag, size = 0x4, offset = 0, fixed_abs, tag = 'sflag constant byte address 0x0 - dummy sync flag']
  #allocation16 [shape = 's32[]', space=sflag, size = 0x4, offset = 0, fixed_abs, tag = 'sflag constant byte address 0x0 - dummy sync flag']
  #allocation17 [shape = 's32[]', space=sflag, size = 0x4, offset = 0, fixed_abs, tag = 'sflag constant byte address 0x0 - dummy sync flag']
  #allocation18 [shape = 's32[]', space=sflag, size = 0x4, offset = 0, fixed_abs, tag = 'sflag constant byte address 0x0 - dummy sync flag']
  #allocation19 [shape = 's32[]', space=sflag, size = 0x4, offset = 0, fixed_abs, tag = 'sflag constant byte address 0x0 - dummy sync flag']
  #allocation20 [shape = 's32[]', space=sflag, size = 0x4, offset = 0, fixed_abs, tag = 'sflag constant byte address 0x0 - dummy sync flag']
  #allocation21 [shape = 's32[]', space=sflag, size = 0x4, offset = 0, fixed_abs, tag = 'sflag constant byte address 0x0 - dummy sync flag']
  #allocation22 [shape = 's32[]', space=sflag, size = 0x4, offset = 0, fixed_abs, tag = 'sflag constant byte address 0x0 - dummy sync flag']
  #allocation23 [shape = 's32[]', space=sflag, size = 0x4, offset = 0, fixed_abs, tag = 'sflag constant byte address 0x0 - dummy sync flag']
  #allocation24 [shape = 's32[]', space=sflag, size = 0x4, offset = 0, fixed_abs, tag = 'sflag constant byte address 0x0 - dummy sync flag']
  #allocation25 [shape = 's32[]', space=sflag, size = 0x4, offset = 0, fixed_abs, tag = 'sflag constant byte address 0x0 - dummy sync flag']
  #allocation26 [shape = 's32[]', space=sflag, size = 0x4, offset = 0, fixed_abs, tag = 'sflag constant byte address 0x0 - dummy sync flag']
  #allocation27 [shape = 's32[]', space=sflag, size = 0x4, offset = 0, fixed_abs, tag = 'sflag constant byte address 0x0 - dummy sync flag']
  #allocation28 [shape = 's32[]', space=sflag, size = 0x4, offset = 0, fixed_abs, tag = 'sflag constant byte address 0x0 - dummy sync flag']
  #allocation29 [shape = 's32[]', space=sflag, size = 0x4, offset = 0, fixed_abs, tag = 'sflag constant byte address 0x0 - dummy sync flag']
  #allocation30 [shape = 's32[]', space=sflag, size = 0x4, offset = 0, fixed_abs, tag = 'sflag constant byte address 0x0 - dummy sync flag']
  #allocation31 [shape = 's32[]', space=sflag, size = 0x4, offset = 0, fixed_abs, tag = 'sflag constant byte address 0x0 - dummy sync flag']
  #allocation32 [shape = 's32[]', space=sflag, size = 0x4, offset = 0, fixed_abs, tag = 'sflag constant byte address 0x0 - dummy sync flag']
  #allocation33 [shape = 's32[]', space=sflag, size = 0x4, offset = 0, fixed_abs, tag = 'sflag constant byte address 0x0 - dummy sync flag']
  #allocation34 [shape = 's32[]', space=sflag, size = 0x4, offset = 0, fixed_abs, tag = 'sflag constant byte address 0x0 - dummy sync flag']
  #allocation35 [shape = 's32[]', space=sflag, size = 0x4, offset = 0, fixed_abs, tag = 'sflag constant byte address 0x0 - dummy sync flag']
  #allocation36 [shape = 's32[]', space=sflag, size = 0x4, offset = 0, fixed_abs, tag = 'sflag constant byte address 0x0 - dummy sync flag']
  #allocation37 [shape = 's32[]', space=sflag, size = 0x4, offset = 0, fixed_abs, tag = 'sflag constant byte address 0x0 - dummy sync flag']
  #allocation38 [shape = 's32[]', space=sflag, size = 0x4, offset = 0, fixed_abs, tag = 'sflag constant byte address 0x0 - dummy sync flag']
  #allocation39 [shape = 's32[]', space=sflag, size = 0x4, offset = 0, fixed_abs, tag = 'sflag constant byte address 0x0 - dummy sync flag']
  #allocation40 [shape = 's32[]', space=sflag, size = 0x4, offset = 0, fixed_abs, tag = 'sflag constant byte address 0x0 - dummy sync flag']
  #allocation41 [shape = 's32[]', space=sflag, size = 0x4, offset = 0, fixed_abs, tag = 'sflag constant byte address 0x0 - dummy sync flag']
  #allocation42 [shape = 's32[]', space=sflag, size = 0x4, offset = 0, fixed_abs, tag = 'sflag constant byte address 0x0 - dummy sync flag']
  #allocation43 [shape = 's32[]', space=sflag, size = 0x4, offset = 0, fixed_abs, tag = 'sflag constant byte address 0x0 - dummy sync flag']
  #allocation44 [shape = 's32[]', space=sflag, size = 0x4, offset = 0, fixed_abs, tag = 'sflag constant byte address 0x0 - dummy sync flag']
  #allocation45 [shape = 's32[]', space=sflag, size = 0x4, offset = 0, fixed_abs, tag = 'sflag constant byte address 0x0 - dummy sync flag']
  #allocation46 [shape = 's32[]', space=sflag, size = 0x4, offset = 0, fixed_abs, tag = 'sflag constant byte address 0x0 - dummy sync flag']
  #allocation47 [shape = 's32[]', space=sflag, size = 0x4, offset = 0, fixed_abs, tag = 'sflag constant byte address 0x0 - dummy sync flag']
  #allocation48 [shape = 's32[]', space=sflag, size = 0x4, offset = 0, fixed_abs, tag = 'sflag constant byte address 0x0 - dummy sync flag']
  #allocation49 [shape = 's32[]', space=sflag, size = 0x4, offset = 0, fixed_abs, tag = 'sflag constant byte address 0x0 - dummy sync flag']
  #allocation50 [shape = 's32[]', space=sflag, size = 0x4, offset = 0, fixed_abs, tag = 'sflag constant byte address 0x0 - dummy sync flag']
  #allocation51 [shape = 's32[]', space=sflag, size = 0x4, offset = 0, fixed_abs, tag = 'sflag constant byte address 0x0 - dummy sync flag']
  #allocation52 [shape = 's32[]', space=sflag, size = 0x4, offset = 0, fixed_abs, tag = 'sflag constant byte address 0x0 - dummy sync flag']
  #allocation53 [shape = 's32[]', space=sflag, size = 0x4, offset = 0, fixed_abs, tag = 'sflag constant byte address 0x0 - dummy sync flag']
  #allocation54 [shape = 's32[]', space=sflag, size = 0x4, offset = 0, fixed_abs, tag = 'sflag constant byte address 0x0 - dummy sync flag']
  #allocation55 [shape = 's32[]', space=sflag, size = 0x4, offset = 0, fixed_abs, tag = 'sflag constant byte address 0x0 - dummy sync flag']
  #allocation56 [shape = 's32[]', space=sflag, size = 0x4, offset = 0, fixed_abs, tag = 'sflag constant byte address 0x0 - dummy sync flag']
  #allocation57 [shape = 's32[]', space=sflag, size = 0x4, offset = 0, fixed_abs, tag = 'sflag constant byte address 0x0 - dummy sync flag']
  #allocation58 [shape = 's32[]', space=sflag, size = 0x4, offset = 0, fixed_abs, tag = 'sflag constant byte address 0x0 - dummy sync flag']
  #allocation59 [shape = 's32[]', space=sflag, size = 0x4, offset = 0, fixed_abs, tag = 'sflag constant byte address 0x0 - dummy sync flag']
  #allocation60 [shape = 's32[]', space=sflag, size = 0x4, offset = 0, fixed_abs, tag = 'sflag constant byte address 0x0 - dummy sync flag']
  #allocation61 [shape = 's32[]', space=sflag, size = 0x4, offset = 0, fixed_abs, tag = 'sflag constant byte address 0x0 - dummy sync flag']
  #allocation62 [shape = 's32[]', space=sflag, size = 0x4, offset = 0, fixed_abs, tag = 'sflag constant byte address 0x0 - dummy sync flag']
  #allocation63 [shape = 's32[]', space=sflag, size = 0x4, offset = 0, fixed_abs, tag = 'sflag constant byte address 0x0 - dummy sync flag']
  #allocation64 [shape = 's32[]', space=sflag, size = 0x4, offset = 0, fixed_abs, tag = 'sflag constant byte address 0x0 - dummy sync flag']
  #allocation65 [shape = 's32[]', space=sflag, size = 0x4, offset = 0, fixed_abs, tag = 'sflag constant byte address 0x0 - dummy sync flag']
  #allocation66 [shape = 's32[]', space=sflag, size = 0x4, offset = 0, fixed_abs, tag = 'sflag constant byte address 0x0 - dummy sync flag']
  #allocation67 [shape = 's32[]', space=sflag, size = 0x4, offset = 0, fixed_abs, tag = 'sflag constant byte address 0x0 - dummy sync flag']
  #allocation68 [shape = 's32[]', space=sflag, size = 0x4, offset = 0, fixed_abs, tag = 'sflag constant byte address 0x0 - dummy sync flag']
  #allocation69 [shape = 's32[]', space=sflag, size = 0x4, offset = 0, fixed_abs, tag = 'sflag constant byte address 0x0 - dummy sync flag']
  #allocation70 [shape = 's32[]', space=sflag, size = 0x4, offset = 0, fixed_abs, tag = 'sflag constant byte address 0x0 - dummy sync flag']
  #allocation71 [shape = 's32[]', space=sflag, size = 0x4, offset = 0, fixed_abs, tag = 'sflag constant byte address 0x0 - dummy sync flag']
  #allocation72 [shape = 's32[]', space=sflag, size = 0x4, offset = 0, fixed_abs, tag = 'sflag constant byte address 0x0 - dummy sync flag']
  #allocation73 [shape = 's32[]', space=sflag, size = 0x4, offset = 0, fixed_abs, tag = 'sflag constant byte address 0x0 - dummy sync flag']
  #allocation74 [shape = 's32[]', space=sflag, size = 0x4, offset = 0, fixed_abs, tag = 'sflag constant byte address 0x0 - dummy sync flag']
  %s0 = inlined_call_operand.hbm [shape: s32[8], index: 0, kind: input, shape index: {}]
  %s1 = inlined_call_operand.vmem [shape: s32[24], index: 1, kind: input, shape index: {}]
  %s2 = inlined_call_operand.hbm [shape: f32[16,128], index: 2, kind: input, shape index: {}]
  %s3 = inlined_call_operand.hbm [shape: f32[1024,128], index: 3, kind: input, shape index: {}]
  %s4 = inlined_call_operand.hbm [shape: bf16[8,128], index: 4, kind: output, shape index: {}]
  %s5 = sld [smem:[#allocation0]]
  $region138: #{tpu_custom_call.1} parent=0
    _
  %s7 = ssub.s32 1, %s5
  %s8 = scalar_select 0, %s7, %s5
  %10 = dma.hbm_to_smem %s0, 16, [#allocation5], [#allocation4]
  %s11 = sshll.u32 %s1, 4
  %s12 = int_to_ptr.vmem [resolvable:$true] %s11
  %14 = dma.vmem_to_smem %s12, 16, [#allocation6], [#allocation4]
  %15 = dma.done [#allocation4], 32
  %16 = sfence
  $region1: #{tpu_custom_call.1} parent=0
    #allocation7 [shape = 'u8[2048]{0}', space=vmem, size = 0x800, scoped, tag = 'output window, operand 0, single buffered']
    #allocation8 [shape = 's32[1]{0}', space=sflag, size = 0x4, scoped, tag = 'scoped memory for tpu_custom_call.1']
    %17 = vsyncpa [#allocation8], 0
    %s18 = sld [smem:[#allocation5]]
    %s19 = smul.addr %s18, 16
    %s20 = scalar_lea.hbm %s2, %s19
    // Predicated region
    $region2: #{tpu_custom_call.1} parent=1 // pred_check
      _
    $region3: #{tpu_custom_call.1} parent=1 // pred_check_branch
      %22 = sbr.rel target = $region5
    $region4: #{tpu_custom_call.1} parent=1 // pred_region
      %23 = sst [smem:[#allocation11]] [#allocation10]
      %24 = sst [smem:[#allocation12]] [#allocation9]
    $region5: #{tpu_custom_call.1} parent=1 // pred_fallthru
      _
    %26 = shalt.err (0)
    %s28 = sshll.u32 [#allocation2], 4
    %s29 = int_to_ptr.vmem [resolvable:$true] %s28
    %31 = dma.hbm_to_vmem [thread:$0]  %s20, 16, %s29, [#allocation3]
    %s32 = sld [smem:[#allocation6]]
    %s33 = smul.addr %s32, 16
    %s34 = scalar_lea.hbm %s3, %s33
    %s35 = scalar_lea.vmem [#allocation2], 8
    %s36 = scalar_lea.sflag [#allocation3], 8
    // Predicated region
    $region6: #{tpu_custom_call.1} parent=1 // pred_check
      _
    $region7: #{tpu_custom_call.1} parent=1 // pred_check_branch
      %38 = sbr.rel target = $region9
    $region8: #{tpu_custom_call.1} parent=1 // pred_region
      %39 = sst [smem:[#allocation11]] [#allocation14]
      %40 = sst [smem:[#allocation12]] [#allocation13]
    $region9: #{tpu_custom_call.1} parent=1 // pred_fallthru
      _
    %42 = shalt.err (0)
    %s44 = sshll.u32 %s35, 4
    %s45 = int_to_ptr.vmem [resolvable:$true] %s44
    %47 = dma.hbm_to_vmem [thread:$0]  %s34, 16, %s45, %s36
    %s48 = sld [smem:[#allocation6 + $0x1]]
    %s49 = smul.addr %s48, 16
    %s50 = scalar_lea.hbm %s3, %s49
    %s51 = scalar_lea.vmem [#allocation2], 16
    %s52 = scalar_lea.sflag [#allocation3], 16
    // Predicated region
    $region10: #{tpu_custom_call.1} parent=1 // pred_check
      _
    $region11: #{tpu_custom_call.1} parent=1 // pred_check_branch
      %54 = sbr.rel target = $region13
    $region12: #{tpu_custom_call.1} parent=1 // pred_region
      %55 = sst [smem:[#allocation11]] [#allocation16]
      %56 = sst [smem:[#allocation12]] [#allocation15]
    $region13: #{tpu_custom_call.1} parent=1 // pred_fallthru
      _
    %58 = shalt.err (0)
    %s60 = sshll.u32 %s51, 4
    %s61 = int_to_ptr.vmem [resolvable:$true] %s60
    %63 = dma.hbm_to_vmem [thread:$0]  %s50, 16, %s61, %s52
    %s64 = sld [smem:[#allocation6 + $0x2]]
    %s65 = smul.addr %s64, 16
    %s66 = scalar_lea.hbm %s3, %s65
    %s67 = scalar_lea.vmem [#allocation2], 24
    %s68 = scalar_lea.sflag [#allocation3], 24
    // Predicated region
    $region14: #{tpu_custom_call.1} parent=1 // pred_check
      _
    $region15: #{tpu_custom_call.1} parent=1 // pred_check_branch
      %70 = sbr.rel target = $region17
    $region16: #{tpu_custom_call.1} parent=1 // pred_region
      %71 = sst [smem:[#allocation11]] [#allocation18]
      %72 = sst [smem:[#allocation12]] [#allocation17]
    $region17: #{tpu_custom_call.1} parent=1 // pred_fallthru
      _
    %74 = shalt.err (0)
    %s76 = sshll.u32 %s67, 4
    %s77 = int_to_ptr.vmem [resolvable:$true] %s76
    %79 = dma.hbm_to_vmem [thread:$0]  %s66, 16, %s77, %s68
    %s80 = sld [smem:[#allocation5 + $0x1]]
    %s81 = smul.addr %s80, 16
    %s82 = scalar_lea.hbm %s2, %s81
    %s83 = scalar_lea.vmem [#allocation2], 1
    %s84 = scalar_lea.sflag [#allocation3], 1
    // Predicated region
    $region18: #{tpu_custom_call.1} parent=1 // pred_check
      _
    $region19: #{tpu_custom_call.1} parent=1 // pred_check_branch
      %86 = sbr.rel target = $region21
    $region20: #{tpu_custom_call.1} parent=1 // pred_region
      %87 = sst [smem:[#allocation11]] [#allocation20]
      %88 = sst [smem:[#allocation12]] [#allocation19]
    $region21: #{tpu_custom_call.1} parent=1 // pred_fallthru
      _
    %90 = shalt.err (0)
    %s92 = sshll.u32 %s83, 4
    %s93 = int_to_ptr.vmem [resolvable:$true] %s92
    %95 = dma.hbm_to_vmem [thread:$0]  %s82, 16, %s93, %s84
    %s96 = sld [smem:[#allocation6 + $0x3]]
    %s97 = smul.addr %s96, 16
    %s98 = scalar_lea.hbm %s3, %s97
    %s99 = scalar_lea.vmem [#allocation2], 9
    %s100 = scalar_lea.sflag [#allocation3], 9
    // Predicated region
    $region22: #{tpu_custom_call.1} parent=1 // pred_check
      _
    $region23: #{tpu_custom_call.1} parent=1 // pred_check_branch
      %102 = sbr.rel target = $region25
    $region24: #{tpu_custom_call.1} parent=1 // pred_region
      %103 = sst [smem:[#allocation11]] [#allocation22]
      %104 = sst [smem:[#allocation12]] [#allocation21]
    $region25: #{tpu_custom_call.1} parent=1 // pred_fallthru
      _
    %106 = shalt.err (0)
    %s108 = sshll.u32 %s99, 4
    %s109 = int_to_ptr.vmem [resolvable:$true] %s108
    %111 = dma.hbm_to_vmem [thread:$0]  %s98, 16, %s109, %s100
    %s112 = sld [smem:[#allocation6 + $0x4]]
    %s113 = smul.addr %s112, 16
    %s114 = scalar_lea.hbm %s3, %s113
    %s115 = scalar_lea.vmem [#allocation2], 17
    %s116 = scalar_lea.sflag [#allocation3], 17
    // Predicated region
    $region26: #{tpu_custom_call.1} parent=1 // pred_check
      _
    $region27: #{tpu_custom_call.1} parent=1 // pred_check_branch
      %118 = sbr.rel target = $region29
    $region28: #{tpu_custom_call.1} parent=1 // pred_region
      %119 = sst [smem:[#allocation11]] [#allocation24]
      %120 = sst [smem:[#allocation12]] [#allocation23]
    $region29: #{tpu_custom_call.1} parent=1 // pred_fallthru
      _
    %122 = shalt.err (0)
    %s124 = sshll.u32 %s115, 4
    %s125 = int_to_ptr.vmem [resolvable:$true] %s124
    %127 = dma.hbm_to_vmem [thread:$0]  %s114, 16, %s125, %s116
    %s128 = sld [smem:[#allocation6 + $0x5]]
    %s129 = smul.addr %s128, 16
    %s130 = scalar_lea.hbm %s3, %s129
    %s131 = scalar_lea.vmem [#allocation2], 25
    %s132 = scalar_lea.sflag [#allocation3], 25
    // Predicated region
    $region30: #{tpu_custom_call.1} parent=1 // pred_check
      _
    $region31: #{tpu_custom_call.1} parent=1 // pred_check_branch
      %134 = sbr.rel target = $region33
    $region32: #{tpu_custom_call.1} parent=1 // pred_region
      %135 = sst [smem:[#allocation11]] [#allocation26]
      %136 = sst [smem:[#allocation12]] [#allocation25]
    $region33: #{tpu_custom_call.1} parent=1 // pred_fallthru
      _
    %138 = shalt.err (0)
    %s140 = sshll.u32 %s131, 4
    %s141 = int_to_ptr.vmem [resolvable:$true] %s140
    %143 = dma.hbm_to_vmem [thread:$0]  %s130, 16, %s141, %s132
    %s144 = sld [smem:[#allocation5 + $0x2]]
    %s145 = smul.addr %s144, 16
    %s146 = scalar_lea.hbm %s2, %s145
    %s147 = scalar_lea.vmem [#allocation2], 2
    %s148 = scalar_lea.sflag [#allocation3], 2
    // Predicated region
    $region34: #{tpu_custom_call.1} parent=1 // pred_check
      _
    $region35: #{tpu_custom_call.1} parent=1 // pred_check_branch
      %150 = sbr.rel target = $region37
    $region36: #{tpu_custom_call.1} parent=1 // pred_region
      %151 = sst [smem:[#allocation11]] [#allocation28]
      %152 = sst [smem:[#allocation12]] [#allocation27]
    $region37: #{tpu_custom_call.1} parent=1 // pred_fallthru
      _
    %154 = shalt.err (0)
    %s156 = sshll.u32 %s147, 4
    %s157 = int_to_ptr.vmem [resolvable:$true] %s156
    %159 = dma.hbm_to_vmem [thread:$0]  %s146, 16, %s157, %s148
    %s160 = sld [smem:[#allocation6 + $0x6]]
    %s161 = smul.addr %s160, 16
    %s162 = scalar_lea.hbm %s3, %s161
    %s163 = scalar_lea.vmem [#allocation2], 10
    %s164 = scalar_lea.sflag [#allocation3], 10
    // Predicated region
    $region38: #{tpu_custom_call.1} parent=1 // pred_check
      _
    $region39: #{tpu_custom_call.1} parent=1 // pred_check_branch
      %166 = sbr.rel target = $region41
    $region40: #{tpu_custom_call.1} parent=1 // pred_region
      %167 = sst [smem:[#allocation11]] [#allocation30]
      %168 = sst [smem:[#allocation12]] [#allocation29]
    $region41: #{tpu_custom_call.1} parent=1 // pred_fallthru
      _
    %170 = shalt.err (0)
    %s172 = sshll.u32 %s163, 4
    %s173 = int_to_ptr.vmem [resolvable:$true] %s172
    %175 = dma.hbm_to_vmem [thread:$0]  %s162, 16, %s173, %s164
    %s176 = sld [smem:[#allocation6 + $0x7]]
    %s177 = smul.addr %s176, 16
    %s178 = scalar_lea.hbm %s3, %s177
    %s179 = scalar_lea.vmem [#allocation2], 18
    %s180 = scalar_lea.sflag [#allocation3], 18
    // Predicated region
    $region42: #{tpu_custom_call.1} parent=1 // pred_check
      _
    $region43: #{tpu_custom_call.1} parent=1 // pred_check_branch
      %182 = sbr.rel target = $region45
    $region44: #{tpu_custom_call.1} parent=1 // pred_region
      %183 = sst [smem:[#allocation11]] [#allocation32]
      %184 = sst [smem:[#allocation12]] [#allocation31]
    $region45: #{tpu_custom_call.1} parent=1 // pred_fallthru
      _
    %186 = shalt.err (0)
    %s188 = sshll.u32 %s179, 4
    %s189 = int_to_ptr.vmem [resolvable:$true] %s188
    %191 = dma.hbm_to_vmem [thread:$0]  %s178, 16, %s189, %s180
    %s192 = sld [smem:[#allocation6 + $0x8]]
    %s193 = smul.addr %s192, 16
    %s194 = scalar_lea.hbm %s3, %s193
    %s195 = scalar_lea.vmem [#allocation2], 26
    %s196 = scalar_lea.sflag [#allocation3], 26
    // Predicated region
    $region46: #{tpu_custom_call.1} parent=1 // pred_check
      _
    $region47: #{tpu_custom_call.1} parent=1 // pred_check_branch
      %198 = sbr.rel target = $region49
    $region48: #{tpu_custom_call.1} parent=1 // pred_region
      %199 = sst [smem:[#allocation11]] [#allocation34]
      %200 = sst [smem:[#allocation12]] [#allocation33]
    $region49: #{tpu_custom_call.1} parent=1 // pred_fallthru
      _
    %202 = shalt.err (0)
    %s204 = sshll.u32 %s195, 4
    %s205 = int_to_ptr.vmem [resolvable:$true] %s204
    %207 = dma.hbm_to_vmem [thread:$0]  %s194, 16, %s205, %s196
    %s208 = sld [smem:[#allocation5 + $0x3]]
    %s209 = smul.addr %s208, 16
    %s210 = scalar_lea.hbm %s2, %s209
    %s211 = scalar_lea.vmem [#allocation2], 3
    %s212 = scalar_lea.sflag [#allocation3], 3
    // Predicated region
    $region50: #{tpu_custom_call.1} parent=1 // pred_check
      _
    $region51: #{tpu_custom_call.1} parent=1 // pred_check_branch
      %214 = sbr.rel target = $region53
    $region52: #{tpu_custom_call.1} parent=1 // pred_region
      %215 = sst [smem:[#allocation11]] [#allocation36]
      %216 = sst [smem:[#allocation12]] [#allocation35]
    $region53: #{tpu_custom_call.1} parent=1 // pred_fallthru
      _
    %218 = shalt.err (0)
    %s220 = sshll.u32 %s211, 4
    %s221 = int_to_ptr.vmem [resolvable:$true] %s220
    %223 = dma.hbm_to_vmem [thread:$0]  %s210, 16, %s221, %s212
    %s224 = sld [smem:[#allocation6 + $0x9]]
    %s225 = smul.addr %s224, 16
    %s226 = scalar_lea.hbm %s3, %s225
    %s227 = scalar_lea.vmem [#allocation2], 11
    %s228 = scalar_lea.sflag [#allocation3], 11
    // Predicated region
    $region54: #{tpu_custom_call.1} parent=1 // pred_check
      _
    $region55: #{tpu_custom_call.1} parent=1 // pred_check_branch
      %230 = sbr.rel target = $region57
    $region56: #{tpu_custom_call.1} parent=1 // pred_region
      %231 = sst [smem:[#allocation11]] [#allocation38]
      %232 = sst [smem:[#allocation12]] [#allocation37]
    $region57: #{tpu_custom_call.1} parent=1 // pred_fallthru
      _
    %234 = shalt.err (0)
    %s236 = sshll.u32 %s227, 4
    %s237 = int_to_ptr.vmem [resolvable:$true] %s236
    %239 = dma.hbm_to_vmem [thread:$0]  %s226, 16, %s237, %s228
    %s240 = sld [smem:[#allocation6 + $0xa]]
    %s241 = smul.addr %s240, 16
    %s242 = scalar_lea.hbm %s3, %s241
    %s243 = scalar_lea.vmem [#allocation2], 19
    %s244 = scalar_lea.sflag [#allocation3], 19
    // Predicated region
    $region58: #{tpu_custom_call.1} parent=1 // pred_check
      _
    $region59: #{tpu_custom_call.1} parent=1 // pred_check_branch
      %246 = sbr.rel target = $region61
    $region60: #{tpu_custom_call.1} parent=1 // pred_region
      %247 = sst [smem:[#allocation11]] [#allocation40]
      %248 = sst [smem:[#allocation12]] [#allocation39]
    $region61: #{tpu_custom_call.1} parent=1 // pred_fallthru
      _
    %250 = shalt.err (0)
    %s252 = sshll.u32 %s243, 4
    %s253 = int_to_ptr.vmem [resolvable:$true] %s252
    %255 = dma.hbm_to_vmem [thread:$0]  %s242, 16, %s253, %s244
    %s256 = sld [smem:[#allocation6 + $0xb]]
    %s257 = smul.addr %s256, 16
    %s258 = scalar_lea.hbm %s3, %s257
    %s259 = scalar_lea.vmem [#allocation2], 27
    %s260 = scalar_lea.sflag [#allocation3], 27
    // Predicated region
    $region62: #{tpu_custom_call.1} parent=1 // pred_check
      _
    $region63: #{tpu_custom_call.1} parent=1 // pred_check_branch
      %262 = sbr.rel target = $region65
    $region64: #{tpu_custom_call.1} parent=1 // pred_region
      %263 = sst [smem:[#allocation11]] [#allocation42]
      %264 = sst [smem:[#allocation12]] [#allocation41]
    $region65: #{tpu_custom_call.1} parent=1 // pred_fallthru
      _
    %266 = shalt.err (0)
    %s268 = sshll.u32 %s259, 4
    %s269 = int_to_ptr.vmem [resolvable:$true] %s268
    %271 = dma.hbm_to_vmem [thread:$0]  %s258, 16, %s269, %s260
    %s272 = sld [smem:[#allocation5 + $0x4]]
    %s273 = smul.addr %s272, 16
    %s274 = scalar_lea.hbm %s2, %s273
    %s275 = scalar_lea.vmem [#allocation2], 4
    %s276 = scalar_lea.sflag [#allocation3], 4
    // Predicated region
    $region66: #{tpu_custom_call.1} parent=1 // pred_check
      _
    $region67: #{tpu_custom_call.1} parent=1 // pred_check_branch
      %278 = sbr.rel target = $region69
    $region68: #{tpu_custom_call.1} parent=1 // pred_region
      %279 = sst [smem:[#allocation11]] [#allocation44]
      %280 = sst [smem:[#allocation12]] [#allocation43]
    $region69: #{tpu_custom_call.1} parent=1 // pred_fallthru
      _
    %282 = shalt.err (0)
    %s284 = sshll.u32 %s275, 4
    %s285 = int_to_ptr.vmem [resolvable:$true] %s284
    %287 = dma.hbm_to_vmem [thread:$0]  %s274, 16, %s285, %s276
    %s288 = sld [smem:[#allocation6 + $0xc]]
    %s289 = smul.addr %s288, 16
    %s290 = scalar_lea.hbm %s3, %s289
    %s291 = scalar_lea.vmem [#allocation2], 12
    %s292 = scalar_lea.sflag [#allocation3], 12
    // Predicated region
    $region70: #{tpu_custom_call.1} parent=1 // pred_check
      _
    $region71: #{tpu_custom_call.1} parent=1 // pred_check_branch
      %294 = sbr.rel target = $region73
    $region72: #{tpu_custom_call.1} parent=1 // pred_region
      %295 = sst [smem:[#allocation11]] [#allocation46]
      %296 = sst [smem:[#allocation12]] [#allocation45]
    $region73: #{tpu_custom_call.1} parent=1 // pred_fallthru
      _
    %298 = shalt.err (0)
    %s300 = sshll.u32 %s291, 4
    %s301 = int_to_ptr.vmem [resolvable:$true] %s300
    %303 = dma.hbm_to_vmem [thread:$0]  %s290, 16, %s301, %s292
    %s304 = sld [smem:[#allocation6 + $0xd]]
    %s305 = smul.addr %s304, 16
    %s306 = scalar_lea.hbm %s3, %s305
    %s307 = scalar_lea.vmem [#allocation2], 20
    %s308 = scalar_lea.sflag [#allocation3], 20
    // Predicated region
    $region74: #{tpu_custom_call.1} parent=1 // pred_check
      _
    $region75: #{tpu_custom_call.1} parent=1 // pred_check_branch
      %310 = sbr.rel target = $region77
    $region76: #{tpu_custom_call.1} parent=1 // pred_region
      %311 = sst [smem:[#allocation11]] [#allocation48]
      %312 = sst [smem:[#allocation12]] [#allocation47]
    $region77: #{tpu_custom_call.1} parent=1 // pred_fallthru
      _
    %314 = shalt.err (0)
    %s316 = sshll.u32 %s307, 4
    %s317 = int_to_ptr.vmem [resolvable:$true] %s316
    %319 = dma.hbm_to_vmem [thread:$0]  %s306, 16, %s317, %s308
    %s320 = sld [smem:[#allocation6 + $0xe]]
    %s321 = smul.addr %s320, 16
    %s322 = scalar_lea.hbm %s3, %s321
    %s323 = scalar_lea.vmem [#allocation2], 28
    %s324 = scalar_lea.sflag [#allocation3], 28
    // Predicated region
    $region78: #{tpu_custom_call.1} parent=1 // pred_check
      _
    $region79: #{tpu_custom_call.1} parent=1 // pred_check_branch
      %326 = sbr.rel target = $region81
    $region80: #{tpu_custom_call.1} parent=1 // pred_region
      %327 = sst [smem:[#allocation11]] [#allocation50]
      %328 = sst [smem:[#allocation12]] [#allocation49]
    $region81: #{tpu_custom_call.1} parent=1 // pred_fallthru
      _
    %330 = shalt.err (0)
    %s332 = sshll.u32 %s323, 4
    %s333 = int_to_ptr.vmem [resolvable:$true] %s332
    %335 = dma.hbm_to_vmem [thread:$0]  %s322, 16, %s333, %s324
    %s336 = sld [smem:[#allocation5 + $0x5]]
    %s337 = smul.addr %s336, 16
    %s338 = scalar_lea.hbm %s2, %s337
    %s339 = scalar_lea.vmem [#allocation2], 5
    %s340 = scalar_lea.sflag [#allocation3], 5
    // Predicated region
    $region82: #{tpu_custom_call.1} parent=1 // pred_check
      _
    $region83: #{tpu_custom_call.1} parent=1 // pred_check_branch
      %342 = sbr.rel target = $region85
    $region84: #{tpu_custom_call.1} parent=1 // pred_region
      %343 = sst [smem:[#allocation11]] [#allocation52]
      %344 = sst [smem:[#allocation12]] [#allocation51]
    $region85: #{tpu_custom_call.1} parent=1 // pred_fallthru
      _
    %346 = shalt.err (0)
    %s348 = sshll.u32 %s339, 4
    %s349 = int_to_ptr.vmem [resolvable:$true] %s348
    %351 = dma.hbm_to_vmem [thread:$0]  %s338, 16, %s349, %s340
    %s352 = sld [smem:[#allocation6 + $0xf]]
    %s353 = smul.addr %s352, 16
    %s354 = scalar_lea.hbm %s3, %s353
    %s355 = scalar_lea.vmem [#allocation2], 13
    %s356 = scalar_lea.sflag [#allocation3], 13
    // Predicated region
    $region86: #{tpu_custom_call.1} parent=1 // pred_check
      _
    $region87: #{tpu_custom_call.1} parent=1 // pred_check_branch
      %358 = sbr.rel target = $region89
    $region88: #{tpu_custom_call.1} parent=1 // pred_region
      %359 = sst [smem:[#allocation11]] [#allocation54]
      %360 = sst [smem:[#allocation12]] [#allocation53]
    $region89: #{tpu_custom_call.1} parent=1 // pred_fallthru
      _
    %362 = shalt.err (0)
    %s364 = sshll.u32 %s355, 4
    %s365 = int_to_ptr.vmem [resolvable:$true] %s364
    %367 = dma.hbm_to_vmem [thread:$0]  %s354, 16, %s365, %s356
    %s368 = sld [smem:[#allocation6 + $0x10]]
    %s369 = smul.addr %s368, 16
    %s370 = scalar_lea.hbm %s3, %s369
    %s371 = scalar_lea.vmem [#allocation2], 21
    %s372 = scalar_lea.sflag [#allocation3], 21
    // Predicated region
    $region90: #{tpu_custom_call.1} parent=1 // pred_check
      _
    $region91: #{tpu_custom_call.1} parent=1 // pred_check_branch
      %374 = sbr.rel target = $region93
    $region92: #{tpu_custom_call.1} parent=1 // pred_region
      %375 = sst [smem:[#allocation11]] [#allocation56]
      %376 = sst [smem:[#allocation12]] [#allocation55]
    $region93: #{tpu_custom_call.1} parent=1 // pred_fallthru
      _
    %378 = shalt.err (0)
    %s380 = sshll.u32 %s371, 4
    %s381 = int_to_ptr.vmem [resolvable:$true] %s380
    %383 = dma.hbm_to_vmem [thread:$0]  %s370, 16, %s381, %s372
    %s384 = sld [smem:[#allocation6 + $0x11]]
    %s385 = smul.addr %s384, 16
    %s386 = scalar_lea.hbm %s3, %s385
    %s387 = scalar_lea.vmem [#allocation2], 29
    %s388 = scalar_lea.sflag [#allocation3], 29
    // Predicated region
    $region94: #{tpu_custom_call.1} parent=1 // pred_check
      _
    $region95: #{tpu_custom_call.1} parent=1 // pred_check_branch
      %390 = sbr.rel target = $region97
    $region96: #{tpu_custom_call.1} parent=1 // pred_region
      %391 = sst [smem:[#allocation11]] [#allocation58]
      %392 = sst [smem:[#allocation12]] [#allocation57]
    $region97: #{tpu_custom_call.1} parent=1 // pred_fallthru
      _
    %394 = shalt.err (0)
    %s396 = sshll.u32 %s387, 4
    %s397 = int_to_ptr.vmem [resolvable:$true] %s396
    %399 = dma.hbm_to_vmem [thread:$0]  %s386, 16, %s397, %s388
    %s400 = sld [smem:[#allocation5 + $0x6]]
    %s401 = smul.addr %s400, 16
    %s402 = scalar_lea.hbm %s2, %s401
    %s403 = scalar_lea.vmem [#allocation2], 6
    %s404 = scalar_lea.sflag [#allocation3], 6
    // Predicated region
    $region98: #{tpu_custom_call.1} parent=1 // pred_check
      _
    $region99: #{tpu_custom_call.1} parent=1 // pred_check_branch
      %406 = sbr.rel target = $region101
    $region100: #{tpu_custom_call.1} parent=1 // pred_region
      %407 = sst [smem:[#allocation11]] [#allocation60]
      %408 = sst [smem:[#allocation12]] [#allocation59]
    $region101: #{tpu_custom_call.1} parent=1 // pred_fallthru
      _
    %410 = shalt.err (0)
    %s412 = sshll.u32 %s403, 4
    %s413 = int_to_ptr.vmem [resolvable:$true] %s412
    %415 = dma.hbm_to_vmem [thread:$0]  %s402, 16, %s413, %s404
    %s416 = sld [smem:[#allocation6 + $0x12]]
    %s417 = smul.addr %s416, 16
    %s418 = scalar_lea.hbm %s3, %s417
    %s419 = scalar_lea.vmem [#allocation2], 14
    %s420 = scalar_lea.sflag [#allocation3], 14
    // Predicated region
    $region102: #{tpu_custom_call.1} parent=1 // pred_check
      _
    $region103: #{tpu_custom_call.1} parent=1 // pred_check_branch
      %422 = sbr.rel target = $region105
    $region104: #{tpu_custom_call.1} parent=1 // pred_region
      %423 = sst [smem:[#allocation11]] [#allocation62]
      %424 = sst [smem:[#allocation12]] [#allocation61]
    $region105: #{tpu_custom_call.1} parent=1 // pred_fallthru
      _
    %426 = shalt.err (0)
    %s428 = sshll.u32 %s419, 4
    %s429 = int_to_ptr.vmem [resolvable:$true] %s428
    %431 = dma.hbm_to_vmem [thread:$0]  %s418, 16, %s429, %s420
    %s432 = sld [smem:[#allocation6 + $0x13]]
    %s433 = smul.addr %s432, 16
    %s434 = scalar_lea.hbm %s3, %s433
    %s435 = scalar_lea.vmem [#allocation2], 22
    %s436 = scalar_lea.sflag [#allocation3], 22
    // Predicated region
    $region106: #{tpu_custom_call.1} parent=1 // pred_check
      _
    $region107: #{tpu_custom_call.1} parent=1 // pred_check_branch
      %438 = sbr.rel target = $region109
    $region108: #{tpu_custom_call.1} parent=1 // pred_region
      %439 = sst [smem:[#allocation11]] [#allocation64]
      %440 = sst [smem:[#allocation12]] [#allocation63]
    $region109: #{tpu_custom_call.1} parent=1 // pred_fallthru
      _
    %442 = shalt.err (0)
    %s444 = sshll.u32 %s435, 4
    %s445 = int_to_ptr.vmem [resolvable:$true] %s444
    %447 = dma.hbm_to_vmem [thread:$0]  %s434, 16, %s445, %s436
    %s448 = sld [smem:[#allocation6 + $0x14]]
    %s449 = smul.addr %s448, 16
    %s450 = scalar_lea.hbm %s3, %s449
    %s451 = scalar_lea.vmem [#allocation2], 30
    %s452 = scalar_lea.sflag [#allocation3], 30
    // Predicated region
    $region110: #{tpu_custom_call.1} parent=1 // pred_check
      _
    $region111: #{tpu_custom_call.1} parent=1 // pred_check_branch
      %454 = sbr.rel target = $region113
    $region112: #{tpu_custom_call.1} parent=1 // pred_region
      %455 = sst [smem:[#allocation11]] [#allocation66]
      %456 = sst [smem:[#allocation12]] [#allocation65]
    $region113: #{tpu_custom_call.1} parent=1 // pred_fallthru
      _
    %458 = shalt.err (0)
    %s460 = sshll.u32 %s451, 4
    %s461 = int_to_ptr.vmem [resolvable:$true] %s460
    %463 = dma.hbm_to_vmem [thread:$0]  %s450, 16, %s461, %s452
    %s464 = sld [smem:[#allocation5 + $0x7]]
    %s465 = smul.addr %s464, 16
    %s466 = scalar_lea.hbm %s2, %s465
    %s467 = scalar_lea.vmem [#allocation2], 7
    %s468 = scalar_lea.sflag [#allocation3], 7
    // Predicated region
    $region114: #{tpu_custom_call.1} parent=1 // pred_check
      _
    $region115: #{tpu_custom_call.1} parent=1 // pred_check_branch
      %470 = sbr.rel target = $region117
    $region116: #{tpu_custom_call.1} parent=1 // pred_region
      %471 = sst [smem:[#allocation11]] [#allocation68]
      %472 = sst [smem:[#allocation12]] [#allocation67]
    $region117: #{tpu_custom_call.1} parent=1 // pred_fallthru
      _
    %474 = shalt.err (0)
    %s476 = sshll.u32 %s467, 4
    %s477 = int_to_ptr.vmem [resolvable:$true] %s476
    %479 = dma.hbm_to_vmem [thread:$0]  %s466, 16, %s477, %s468
    %s480 = sld [smem:[#allocation6 + $0x15]]
    %s481 = smul.addr %s480, 16
    %s482 = scalar_lea.hbm %s3, %s481
    %s483 = scalar_lea.vmem [#allocation2], 15
    %s484 = scalar_lea.sflag [#allocation3], 15
    // Predicated region
    $region118: #{tpu_custom_call.1} parent=1 // pred_check
      _
    $region119: #{tpu_custom_call.1} parent=1 // pred_check_branch
      %486 = sbr.rel target = $region121
    $region120: #{tpu_custom_call.1} parent=1 // pred_region
      %487 = sst [smem:[#allocation11]] [#allocation70]
      %488 = sst [smem:[#allocation12]] [#allocation69]
    $region121: #{tpu_custom_call.1} parent=1 // pred_fallthru
      _
    %490 = shalt.err (0)
    %s492 = sshll.u32 %s483, 4
    %s493 = int_to_ptr.vmem [resolvable:$true] %s492
    %495 = dma.hbm_to_vmem [thread:$0]  %s482, 16, %s493, %s484
    %s496 = sld [smem:[#allocation6 + $0x16]]
    %s497 = smul.addr %s496, 16
    %s498 = scalar_lea.hbm %s3, %s497
    %s499 = scalar_lea.vmem [#allocation2], 23
    %s500 = scalar_lea.sflag [#allocation3], 23
    // Predicated region
    $region122: #{tpu_custom_call.1} parent=1 // pred_check
      _
    $region123: #{tpu_custom_call.1} parent=1 // pred_check_branch
      %502 = sbr.rel target = $region125
    $region124: #{tpu_custom_call.1} parent=1 // pred_region
      %503 = sst [smem:[#allocation11]] [#allocation72]
      %504 = sst [smem:[#allocation12]] [#allocation71]
    $region125: #{tpu_custom_call.1} parent=1 // pred_fallthru
      _
    %506 = shalt.err (0)
    %s508 = sshll.u32 %s499, 4
    %s509 = int_to_ptr.vmem [resolvable:$true] %s508
    %511 = dma.hbm_to_vmem [thread:$0]  %s498, 16, %s509, %s500
    %s512 = sld [smem:[#allocation6 + $0x17]]
    %s513 = smul.addr %s512, 16
    %s514 = scalar_lea.hbm %s3, %s513
    %s515 = scalar_lea.vmem [#allocation2], 31
    %s516 = scalar_lea.sflag [#allocation3], 31
    // Predicated region
    $region126: #{tpu_custom_call.1} parent=1 // pred_check
      _
    $region127: #{tpu_custom_call.1} parent=1 // pred_check_branch
      %518 = sbr.rel target = $region129
    $region128: #{tpu_custom_call.1} parent=1 // pred_region
      %519 = sst [smem:[#allocation11]] [#allocation74]
      %520 = sst [smem:[#allocation12]] [#allocation73]
    $region129: #{tpu_custom_call.1} parent=1 // pred_fallthru
      _
    %522 = shalt.err (0)
    %s524 = sshll.u32 %s515, 4
    %s525 = int_to_ptr.vmem [resolvable:$true] %s524
    %527 = dma.hbm_to_vmem [thread:$0]  %s514, 16, %s525, %s516
    %s528 = smul.u32 1, 1
    %s529 = sshll.u32 %s528, 4
    %530 = dma.done [#allocation3], %s529
    %s531 = sshll.u32 %s528, 4
    %532 = dma.done %s36, %s531
    %s533 = sshll.u32 %s528, 4
    %534 = dma.done %s52, %s533
    %s535 = sshll.u32 %s528, 4
    %536 = dma.done %s68, %s535
    %s537 = sshll.u32 %s528, 4
    %538 = dma.done %s84, %s537
    %s539 = sshll.u32 %s528, 4
    %540 = dma.done %s100, %s539
    %s541 = sshll.u32 %s528, 4
    %542 = dma.done %s116, %s541
    %s543 = sshll.u32 %s528, 4
    %544 = dma.done %s132, %s543
    %s545 = sshll.u32 %s528, 4
    %546 = dma.done %s148, %s545
    %s547 = sshll.u32 %s528, 4
    %548 = dma.done %s164, %s547
    %s549 = sshll.u32 %s528, 4
    %550 = dma.done %s180, %s549
    %s551 = sshll.u32 %s528, 4
    %552 = dma.done %s196, %s551
    %s553 = sshll.u32 %s528, 4
    %554 = dma.done %s212, %s553
    %s555 = sshll.u32 %s528, 4
    %556 = dma.done %s228, %s555
    %s557 = sshll.u32 %s528, 4
    %558 = dma.done %s244, %s557
    %s559 = sshll.u32 %s528, 4
    %560 = dma.done %s260, %s559
    %s561 = sshll.u32 %s528, 4
    %562 = dma.done %s276, %s561
    %s563 = sshll.u32 %s528, 4
    %564 = dma.done %s292, %s563
    %s565 = sshll.u32 %s528, 4
    %566 = dma.done %s308, %s565
    %s567 = sshll.u32 %s528, 4
    %568 = dma.done %s324, %s567
    %s569 = sshll.u32 %s528, 4
    %570 = dma.done %s340, %s569
    %s571 = sshll.u32 %s528, 4
    %572 = dma.done %s356, %s571
    %s573 = sshll.u32 %s528, 4
    %574 = dma.done %s372, %s573
    %s575 = sshll.u32 %s528, 4
    %576 = dma.done %s388, %s575
    %s577 = sshll.u32 %s528, 4
    %578 = dma.done %s404, %s577
    %s579 = sshll.u32 %s528, 4
    %580 = dma.done %s420, %s579
    %s581 = sshll.u32 %s528, 4
    %582 = dma.done %s436, %s581
    %s583 = sshll.u32 %s528, 4
    %584 = dma.done %s452, %s583
    %s585 = sshll.u32 %s528, 4
    %586 = dma.done %s468, %s585
    %s587 = sshll.u32 %s528, 4
    %588 = dma.done %s484, %s587
    %s589 = sshll.u32 %s528, 4
    %590 = dma.done %s500, %s589
    %s591 = sshll.u32 %s528, 4
    %592 = dma.done %s516, %s591
    %v593 = vld [vmem:[#allocation2] sm:$0xff]
    %v594 = vld [vmem:[#allocation2 + $0x8] sm:$0xff]
    %v595 = vadd.f32 %v593, %v594
    %v596 = vld [vmem:[#allocation2 + $0x10] sm:$0xff]
    %v597 = vadd.f32 %v595, %v596
    %v598 = vld [vmem:[#allocation2 + $0x18] sm:$0xff]
    %v599 = vadd.f32 %v597, %v598
    %v600 = vpack.c.bf16 %v599, %v599
    %601 = vst [vmem:[#allocation7] sm:$0xf] %v600
    // Predicated region
    $region130: #{tpu_custom_call.1} parent=1 // pred_check
      _
    $region131: #{tpu_custom_call.1} parent=1 // pred_check_branch
      %603 = sbr.rel (0) target = $region133
    $region132: #{tpu_custom_call.1} parent=1 // pred_region
      %s605 = ssub.s32 64, 64
      %606 = vsyncadd [#allocation8], %s605
      %s608 = sshll.u32 [#allocation7], 4
      %s609 = int_to_ptr.vmem [resolvable:$true] %s608
      %611 = dma.vmem_to_hbm [thread:$0]  %s609, 64, %s4, [#allocation8]
    $region133: #{tpu_custom_call.1} parent=1 // pred_fallthru
      _
    // Predicated region
    $region134: #{tpu_custom_call.1} parent=1 // pred_check
      _
    $region135: #{tpu_custom_call.1} parent=1 // pred_check_branch
      %613 = sbr.rel (0) target = $region137
    $region136: #{tpu_custom_call.1} parent=1 // pred_region
      %614 = dma.done [#allocation8], 64
    $region137: #{tpu_custom_call.1} parent=1 // pred_fallthru
      _
    %615 = vsyncpa [#allocation8], 1
  %616 = vsyncmov [#allocation3]
  %s617 = vpop.sfrf %616
  %p618 = scmp.eq.s32.totalorder %s617, 0
  %p619 = pneg %p618
  %621 = shalt.err (%p619)
  %s622 = scalar_lea.sflag [#allocation3], 1
  %623 = vsyncmov %s622
  %s624 = vpop.sfrf %623
  %p625 = scmp.eq.s32.totalorder %s624, 0
  %p626 = pneg %p625
  %628 = shalt.err (%p626)
  %s629 = scalar_lea.sflag [#allocation3], 2
  %630 = vsyncmov %s629
  %s631 = vpop.sfrf %630
  %p632 = scmp.eq.s32.totalorder %s631, 0
  %p633 = pneg %p632
  %635 = shalt.err (%p633)
  %s636 = scalar_lea.sflag [#allocation3], 3
  %637 = vsyncmov %s636
  %s638 = vpop.sfrf %637
  %p639 = scmp.eq.s32.totalorder %s638, 0
  %p640 = pneg %p639
  %642 = shalt.err (%p640)
  %s643 = scalar_lea.sflag [#allocation3], 4
  %644 = vsyncmov %s643
  %s645 = vpop.sfrf %644
  %p646 = scmp.eq.s32.totalorder %s645, 0
  %p647 = pneg %p646
  %649 = shalt.err (%p647)
  %s650 = scalar_lea.sflag [#allocation3], 5
  %651 = vsyncmov %s650
  %s652 = vpop.sfrf %651
  %p653 = scmp.eq.s32.totalorder %s652, 0
  %p654 = pneg %p653
  %656 = shalt.err (%p654)
  %s657 = scalar_lea.sflag [#allocation3], 6
  %658 = vsyncmov %s657
  %s659 = vpop.sfrf %658
  %p660 = scmp.eq.s32.totalorder %s659, 0
  %p661 = pneg %p660
  %663 = shalt.err (%p661)
  %s664 = scalar_lea.sflag [#allocation3], 7
  %665 = vsyncmov %s664
  %s666 = vpop.sfrf %665
  %p667 = scmp.eq.s32.totalorder %s666, 0
  %p668 = pneg %p667
  %670 = shalt.err (%p668)
  %s671 = scalar_lea.sflag [#allocation3], 8
  %672 = vsyncmov %s671
  %s673 = vpop.sfrf %672
  %p674 = scmp.eq.s32.totalorder %s673, 0
  %p675 = pneg %p674
  %677 = shalt.err (%p675)
  %s678 = scalar_lea.sflag [#allocation3], 9
  %679 = vsyncmov %s678
  %s680 = vpop.sfrf %679
  %p681 = scmp.eq.s32.totalorder %s680, 0
  %p682 = pneg %p681
  %684 = shalt.err (%p682)
  %s685 = scalar_lea.sflag [#allocation3], 10
  %686 = vsyncmov %s685
  %s687 = vpop.sfrf %686
  %p688 = scmp.eq.s32.totalorder %s687, 0
  %p689 = pneg %p688
  %691 = shalt.err (%p689)
  %s692 = scalar_lea.sflag [#allocation3], 11
  %693 = vsyncmov %s692
  %s694 = vpop.sfrf %693
  %p695 = scmp.eq.s32.totalorder %s694, 0
  %p696 = pneg %p695
  %698 = shalt.err (%p696)
  %s699 = scalar_lea.sflag [#allocation3], 12
  %700 = vsyncmov %s699
  %s701 = vpop.sfrf %700
  %p702 = scmp.eq.s32.totalorder %s701, 0
  %p703 = pneg %p702
  %705 = shalt.err (%p703)
  %s706 = scalar_lea.sflag [#allocation3], 13
  %707 = vsyncmov %s706
  %s708 = vpop.sfrf %707
  %p709 = scmp.eq.s32.totalorder %s708, 0
  %p710 = pneg %p709
  %712 = shalt.err (%p710)
  %s713 = scalar_lea.sflag [#allocation3], 14
  %714 = vsyncmov %s713
  %s715 = vpop.sfrf %714
  %p716 = scmp.eq.s32.totalorder %s715, 0
  %p717 = pneg %p716
  %719 = shalt.err (%p717)
  %s720 = scalar_lea.sflag [#allocation3], 15
  %721 = vsyncmov %s720
  %s722 = vpop.sfrf %721
  %p723 = scmp.eq.s32.totalorder %s722, 0
  %p724 = pneg %p723
  %726 = shalt.err (%p724)
  %s727 = scalar_lea.sflag [#allocation3], 16
  %728 = vsyncmov %s727
  %s729 = vpop.sfrf %728
  %p730 = scmp.eq.s32.totalorder %s729, 0
  %p731 = pneg %p730
  %733 = shalt.err (%p731)
  %s734 = scalar_lea.sflag [#allocation3], 17
  %735 = vsyncmov %s734
  %s736 = vpop.sfrf %735
  %p737 = scmp.eq.s32.totalorder %s736, 0
  %p738 = pneg %p737
  %740 = shalt.err (%p738)
  %s741 = scalar_lea.sflag [#allocation3], 18
  %742 = vsyncmov %s741
  %s743 = vpop.sfrf %742
  %p744 = scmp.eq.s32.totalorder %s743, 0
  %p745 = pneg %p744
  %747 = shalt.err (%p745)
  %s748 = scalar_lea.sflag [#allocation3], 19
  %749 = vsyncmov %s748
  %s750 = vpop.sfrf %749
  %p751 = scmp.eq.s32.totalorder %s750, 0
  %p752 = pneg %p751
  %754 = shalt.err (%p752)
  %s755 = scalar_lea.sflag [#allocation3], 20
  %756 = vsyncmov %s755
  %s757 = vpop.sfrf %756
  %p758 = scmp.eq.s32.totalorder %s757, 0
  %p759 = pneg %p758
  %761 = shalt.err (%p759)
  %s762 = scalar_lea.sflag [#allocation3], 21
  %763 = vsyncmov %s762
  %s764 = vpop.sfrf %763
  %p765 = scmp.eq.s32.totalorder %s764, 0
  %p766 = pneg %p765
  %768 = shalt.err (%p766)
  %s769 = scalar_lea.sflag [#allocation3], 22
  %770 = vsyncmov %s769
  %s771 = vpop.sfrf %770
  %p772 = scmp.eq.s32.totalorder %s771, 0
  %p773 = pneg %p772
  %775 = shalt.err (%p773)
  %s776 = scalar_lea.sflag [#allocation3], 23
  %777 = vsyncmov %s776
  %s778 = vpop.sfrf %777
  %p779 = scmp.eq.s32.totalorder %s778, 0
  %p780 = pneg %p779
  %782 = shalt.err (%p780)
  %s783 = scalar_lea.sflag [#allocation3], 24
  %784 = vsyncmov %s783
  %s785 = vpop.sfrf %784
  %p786 = scmp.eq.s32.totalorder %s785, 0
  %p787 = pneg %p786
  %789 = shalt.err (%p787)
  %s790 = scalar_lea.sflag [#allocation3], 25
  %791 = vsyncmov %s790
  %s792 = vpop.sfrf %791
  %p793 = scmp.eq.s32.totalorder %s792, 0
  %p794 = pneg %p793
  %796 = shalt.err (%p794)
  %s797 = scalar_lea.sflag [#allocation3], 26
  %798 = vsyncmov %s797
  %s799 = vpop.sfrf %798
  %p800 = scmp.eq.s32.totalorder %s799, 0
  %p801 = pneg %p800
  %803 = shalt.err (%p801)
  %s804 = scalar_lea.sflag [#allocation3], 27
  %805 = vsyncmov %s804
  %s806 = vpop.sfrf %805
  %p807 = scmp.eq.s32.totalorder %s806, 0
  %p808 = pneg %p807
  %810 = shalt.err (%p808)
  %s811 = scalar_lea.sflag [#allocation3], 28
  %812 = vsyncmov %s811
  %s813 = vpop.sfrf %812
  %p814 = scmp.eq.s32.totalorder %s813, 0
  %p815 = pneg %p814
  %817 = shalt.err (%p815)
  %s818 = scalar_lea.sflag [#allocation3], 29
  %819 = vsyncmov %s818
  %s820 = vpop.sfrf %819
  %p821 = scmp.eq.s32.totalorder %s820, 0
  %p822 = pneg %p821
  %824 = shalt.err (%p822)
  %s825 = scalar_lea.sflag [#allocation3], 30
  %826 = vsyncmov %s825
  %s827 = vpop.sfrf %826
  %p828 = scmp.eq.s32.totalorder %s827, 0
  %p829 = pneg %p828
  %831 = shalt.err (%p829)
  %s832 = scalar_lea.sflag [#allocation3], 31
  %833 = vsyncmov %s832
  %s834 = vpop.sfrf %833
  %p835 = scmp.eq.s32.totalorder %s834, 0
  %p836 = pneg %p835
  %838 = shalt.err (%p836)

</llo_original>
